<compile_context>
chip_gen: v6e
topology: v6e:2x2x1
jax: 0.10.0
libtpu: 0.0.40
codegen_flags: <defaults>
</compile_context>

<pallas_src>
import functools

import jax
import jax.numpy as jnp
from jax import lax
from jax.experimental import pallas as pl
from jax.experimental.pallas import tpu as pltpu


def _round_up(x, m):
    return ((x + m - 1) // m) * m


def _pick_block(total, pref, quantum):
    """Largest multiple of `quantum` that divides `total` and is <= max(pref, quantum)."""
    b = min(pref, total)
    b = max(quantum, (b // quantum) * quantum)
    while total % b != 0:
        b -= quantum
    return b


@functools.lru_cache(maxsize=None)
def _vmem_limit_bytes():
    """Generation-aware scoped-VMEM limit: ~75% of physical capacity
    (≈48 MiB on v7x's 64 MiB, ≈96 MiB on v5e/v6e's 128 MiB), with a safe fallback."""
    cap = 128 * 1024 * 1024
    try:
        cap = int(pltpu.get_tpu_info().vmem_capacity_bytes)
    except Exception:
        pass
    return max(32 * 1024 * 1024, min(cap * 3 // 4, 100 * 1024 * 1024))


# ----------------------------------------------------------------------------
# Tiled linear kernel: out = relu?(x @ w + b)
#   x: (M, K) bf16, w: (K, N) bf16 (pre-padded), b: (1, N) f32 (pre-padded)
#   grid = (M//bm, N//bn, K//bk); f32 VMEM accumulator; K is the reduction axis.
# ----------------------------------------------------------------------------
def _linear_kernel(x_ref, w_ref, b_ref, o_ref, acc_ref, *, apply_relu):
    k = pl.program_id(2)

    @pl.when(k == 0)
    def _():
        acc_ref[...] = jnp.zeros_like(acc_ref)

    acc_ref[...] += jnp.dot(x_ref[...], w_ref[...],
                            preferred_element_type=jnp.float32)

    @pl.when(k == pl.num_programs(2) - 1)
    def _():
        y = acc_ref[...] + b_ref[...]
        if apply_relu:
            y = jnp.maximum(y, 0.0)
        o_ref[...] = y.astype(o_ref.dtype)


def pallas_linear(x, w_p, b_p, *, apply_relu=False, out_dtype=jnp.bfloat16,
                  tm=512, tn=512, tk=512):
    """y = relu?(x @ w_p + b_p).  w_p:(Kp,Np) bf16 and b_p:(1,Np) f32 are pre-padded
    at prepare_params() time; only the activation is (possibly) padded here."""
    M, K = x.shape
    Kp, Npad = w_p.shape
    assert Kp % 128 == 0 and Npad % 128 == 0 and K <= Kp
    assert b_p.shape == (1, Npad)

    Mp = _round_up(M, 8)
    bm = _pick_block(Mp, tm, 8)
    bn = _pick_block(Npad, tn, 128)
    bk = _pick_block(Kp, tk, 128)

    # Cast BEFORE padding (half-size intermediate); skip padding when aligned.
    x = x.astype(jnp.bfloat16)
    if (Mp, Kp) != (M, K):
        x = jnp.pad(x, ((0, Mp - M), (0, Kp - K)))

    grid = (Mp // bm, Npad // bn, Kp // bk)

    cost = pl.CostEstimate(
        flops=int(2 * Mp * Npad * Kp),
        transcendentals=0,
        bytes_accessed=int(Mp * Kp * 2 + Kp * Npad * 2 + Npad * 4
                           + Mp * Npad * jnp.dtype(out_dtype).itemsize),
    )

    out = pl.pallas_call(
        functools.partial(_linear_kernel, apply_relu=apply_relu),
        out_shape=jax.ShapeDtypeStruct((Mp, Npad), out_dtype),
        grid_spec=pltpu.PrefetchScalarGridSpec(
            num_scalar_prefetch=0,
            grid=grid,
            in_specs=[
                pl.BlockSpec((bm, bk), lambda i, j, k: (i, k)),
                pl.BlockSpec((bk, bn), lambda i, j, k: (k, j)),
                pl.BlockSpec((1, bn), lambda i, j, k: (0, j)),
            ],
            out_specs=pl.BlockSpec((bm, bn), lambda i, j, k: (i, j)),
            scratch_shapes=[pltpu.VMEM((bm, bn), jnp.float32)],
        ),
        compiler_params=pltpu.CompilerParams(
            dimension_semantics=("parallel", "parallel", "arbitrary"),
            vmem_limit_bytes=_vmem_limit_bytes(),
        ),
        cost_estimate=cost,
    )(x, w_p, b_p)

    # Keep padded columns (downstream weights have zero rows there); only slice rows.
    return out[:M] if Mp != M else out


# ----------------------------------------------------------------------------
# LSTM recurrence kernel (PyTorch semantics, zero init state, gate order i,f,g,o).
# The input projection Z_x = x @ W_ih^T + (b_ih + b_hh) is precomputed OUTSIDE
# (one large tiled matmul over the whole sequence, bf16 output). Here we only do
# the sequential part: for each of TT timesteps in this block,
#   z = Z_x[t] + h_{t-1} @ W_hh^T ; gates ; state update.
#
#   zx_ref : (TT, bnp, 4*Hp) bf16   whh_hbm : (Hp, 4*Hp) bf16 (stays in HBM)
#   h_out  : (TT, bnp, Hp)   bf16   scratch : whh VMEM copy, DMA sem, h/c f32 carry
# grid = (batch tiles [parallel], time blocks [arbitrary]); Hp multiple of 128 so
# gate slices are 128-lane aligned and stores are lane-dense.
# ----------------------------------------------------------------------------
def _lstm_recurrence_kernel(zx_ref, whh_hbm, h_out_ref,
                            whh_vmem, whh_sem, h_sc, c_sc, *, hidden, tt_block):
    t_blk = pl.program_id(1)

    @pl.when(t_blk == 0)
    def _():
        # Single-buffered resident weight: DMA W_hh into VMEM once per batch tile
        # (it never changes), and reset the carried state for this batch tile.
        cp = pltpu.make_async_copy(whh_hbm, whh_vmem, whh_sem)
        cp.start()
        h_sc[...] = jnp.zeros_like(h_sc)
        c_sc[...] = jnp.zeros_like(c_sc)
        cp.wait()

    whh = whh_vmem[...]

    def step(tt, carry):
        h_prev, c_prev = carry
        z = zx_ref[tt].astype(jnp.float32) + jnp.dot(
            h_prev.astype(jnp.bfloat16), whh, preferred_element_type=jnp.float32)
        i = jax.nn.sigmoid(z[:, 0 * hidden:1 * hidden])
        f = jax.nn.sigmoid(z[:, 1 * hidden:2 * hidden])
        g = jnp.tanh(z[:, 2 * hidden:3 * hidden])
        o = jax.nn.sigmoid(z[:, 3 * hidden:4 * hidden])
        c_new = f * c_prev + i * g
        h_new = o * jnp.tanh(c_new)
        h_out_ref[tt] = h_new.astype(h_out_ref.dtype)
        return h_new, c_new

    h_fin, c_fin = lax.fori_loop(0, tt_block, step,
                                 (h_sc[...], c_sc[...]), unroll=True)
    h_sc[...] = h_fin
    c_sc[...] = c_fin


def pallas_lstm_layer(x_seq, layer):
    """One LSTM layer over a (T, Np, In_p) bf16 sequence, zero initial state.
    Returns (T, Np, Hp) bf16 hidden states (padded cols/rows carried through)."""
    T, Np, In_p = x_seq.shape
    whh_p = layer["w_hh"]
    Hp = whh_p.shape[0]

    # Hoisted input projection: one large tiled bf16 matmul over the whole sequence.
    zx = pallas_linear(x_seq.reshape(T * Np, In_p), layer["w_ih"], layer["b"],
                       apply_relu=False, out_dtype=jnp.bfloat16)
    zx = zx.reshape(T, Np, 4 * Hp)

    # Time-blocking: TT timesteps per grid step (prefer a divisor of T to avoid padding).
    TT = min(8, T)
    for cand in range(min(8, T), 1, -1):
        if T % cand == 0:
            TT = cand
            break
    Tp = _round_up(T, TT)
    if Tp != T:
        zx = jnp.pad(zx, ((0, Tp - T), (0, 0), (0, 0)))

    # Batch tiling: parallel axis lets v7x's two TensorCores split the recurrence;
    # single tile (no effect) for small batches / single-TC chips.
    bnp = Np // 2 if (Np >= 16 and Np % 16 == 0) else Np
    grid = (Np // bnp, Tp // TT)

    cost = pl.CostEstimate(
        flops=int(2 * Tp * Np * Hp * 4 * Hp),
        transcendentals=int(5 * Tp * Np * Hp),
        bytes_accessed=int(Tp * Np * 4 * Hp * 2 + Hp * 4 * Hp * 2 + Tp * Np * Hp * 2),
    )

    h_seq = pl.pallas_call(
        functools.partial(_lstm_recurrence_kernel, hidden=Hp, tt_block=TT),
        out_shape=jax.ShapeDtypeStruct((Tp, Np, Hp), jnp.bfloat16),
        grid_spec=pltpu.PrefetchScalarGridSpec(
            num_scalar_prefetch=0,
            grid=grid,
            in_specs=[
                pl.BlockSpec((TT, bnp, 4 * Hp), lambda b, t: (t, b, 0)),
                pl.BlockSpec(memory_space=pl.ANY),   # W_hh: manual single-buffered copy
            ],
            out_specs=pl.BlockSpec((TT, bnp, Hp), lambda b, t: (t, b, 0)),
            scratch_shapes=[
                pltpu.VMEM((Hp, 4 * Hp), jnp.bfloat16),   # resident W_hh
                pltpu.SemaphoreType.DMA(()),
                pltpu.VMEM((bnp, Hp), jnp.float32),       # h carry
                pltpu.VMEM((bnp, Hp), jnp.float32),       # c carry
            ],
        ),
        compiler_params=pltpu.CompilerParams(
            dimension_semantics=("parallel", "arbitrary"),
            vmem_limit_bytes=_vmem_limit_bytes(),
        ),
        cost_estimate=cost,
    )(zx, whh_p)

    return h_seq[:T] if Tp != T else h_seq


# ----------------------------------------------------------------------------
# Model forward (CNNtoRNN.forward)
# ----------------------------------------------------------------------------
def encoder_forward(images, prep):
    # TODO(synk): pretrained inception_v3 backbone has no clean in-script equivalent;
    # stand-in = global average pool + backbone fc, then the trainable fc head + ReLU.
    # Dropout = identity (eval). Padded feature columns are zero and carried forward.
    pooled = jnp.mean(images, axis=(2, 3)).astype(jnp.bfloat16)                   # (N, C)
    feat = pallas_linear(pooled, prep["bb_w"], prep["bb_b"], apply_relu=True)      # (N, Fp)
    return pallas_linear(feat, prep["fc_w"], prep["fc_b"], apply_relu=True)        # (N, Ep)


def decoder_forward(features, captions, prep, *, vocab_size):
    N = features.shape[0]
    Np = _round_up(N, 8)
    # embeddings = dropout(embed(captions)) -> dropout identity in eval
    emb = jnp.take(prep["embed"], captions, axis=0)             # (T, N, Ep) bf16
    x = jnp.concatenate([features[None, :, :], emb], axis=0)    # (T+1, N, Ep) bf16
    if Np != N:                                                  # pad batch ONCE
        x = jnp.pad(x, ((0, 0), (0, Np - N), (0, 0)))
    for layer in prep["lstm"]:
        x = pallas_lstm_layer(x, layer)                          # (T+1, Np, Hp) bf16
    Tp1, _, Hp = x.shape
    logits = pallas_linear(x.reshape(Tp1 * Np, Hp), prep["lin_w"], prep["lin_b"],
                           apply_relu=False, out_dtype=jnp.float32)
    logits = logits.reshape(Tp1, Np, -1)
    return logits[:, :N, :vocab_size]                            # (T+1, N, V)


def cnn_to_rnn_forward(images, captions, prep, *, vocab_size):
    features = encoder_forward(images, prep)
    return decoder_forward(features, captions, prep, vocab_size=vocab_size)


# ----------------------------------------------------------------------------
# Deterministic parameter construction (raw, PyTorch-layout, f32) and one-time
# kernel-ready preparation (pad + bf16 cast).
# ----------------------------------------------------------------------------
def init_params(key, *, in_channels, feat_dim, embed_size, hidden_size,
                vocab_size, num_layers):
    keys = iter(jax.random.split(key, 8 + 4 * num_layers))

    def rn(shape, scale=0.1):
        return (scale * jax.random.normal(next(keys), shape)).astype(jnp.float32)

    params = {
        # encoder stand-in backbone fc + trainable fc head
        "bb_w": rn((in_channels, feat_dim)),
        "bb_b": rn((1, feat_dim)),
        "fc_w": rn((feat_dim, embed_size)),
        "fc_b": rn((1, embed_size)),
        # decoder
        "embed": rn((vocab_size, embed_size)),
        "lin_w": rn((hidden_size, vocab_size)),
        "lin_b": rn((1, vocab_size)),
        "lstm": [],
    }
    for layer in range(num_layers):
        in_dim = embed_size if layer == 0 else hidden_size
        w_ih_t = rn((in_dim, 4 * hidden_size))
        w_hh_t = rn((hidden_size, 4 * hidden_size))
        b_ih = rn((1, 4 * hidden_size))
        b_hh = rn((1, 4 * hidden_size))
        params["lstm"].append({"w_ih_t": w_ih_t, "w_hh_t": w_hh_t, "b": b_ih + b_hh})
    return params


def _pad_gate_cols(w, H, Hp):
    """Pad each of the 4 gate blocks of the last dim from H to Hp columns."""
    lead = w.shape[0]
    w4 = w.reshape(lead, 4, H)
    w4 = jnp.pad(w4, ((0, 0), (0, 0), (0, Hp - H)))
    return w4.reshape(lead, 4 * Hp)


def _pad2(w, rows_to, cols_to):
    r, c = w.shape
    return jnp.pad(w, ((0, rows_to - r), (0, cols_to - c)))


def prepare_params(params):
    """One-time (8,128)-aligned / per-gate padding and bf16 cast of every weight,
    so the per-forward wrappers touch no weight bytes outside the kernels."""
    C, F = params["bb_w"].shape
    _, E = params["fc_w"].shape
    V, _ = params["embed"].shape
    H = params["lstm"][0]["w_hh_t"].shape[0]
    Cp, Fp, Ep, Hp, Vp = (_round_up(d, 128) for d in (C, F, E, H, V))

    prep = {
        "bb_w": _pad2(params["bb_w"].astype(jnp.bfloat16), Cp, Fp),
        "bb_b": _pad2(params["bb_b"], 1, Fp),
        "fc_w": _pad2(params["fc_w"].astype(jnp.bfloat16), Fp, Ep),
        "fc_b": _pad2(params["fc_b"], 1, Ep),
        "embed": _pad2(params["embed"].astype(jnp.bfloat16), V, Ep),
        "lin_w": _pad2(params["lin_w"].astype(jnp.bfloat16), Hp, Vp),
        "lin_b": _pad2(params["lin_b"], 1, Vp),
        "lstm": [],
    }
    for i, layer in enumerate(params["lstm"]):
        in_p = Ep if i == 0 else Hp
        w_ih = _pad_gate_cols(layer["w_ih_t"], H, Hp)
        w_ih = _pad2(w_ih, in_p, 4 * Hp).astype(jnp.bfloat16)     # (In_p, 4Hp) bf16
        w_hh = _pad_gate_cols(layer["w_hh_t"], H, Hp)
        w_hh = _pad2(w_hh, Hp, 4 * Hp).astype(jnp.bfloat16)       # (Hp,  4Hp) bf16
        b = _pad_gate_cols(layer["b"], H, Hp)                     # (1,   4Hp) f32
        prep["lstm"].append({"w_ih": w_ih, "w_hh": w_hh, "b": b})
    return prep


if __name__ == "__main__":
    # Small, self-consistent shapes.
    batch = 2
    in_channels = 4
    spatial = 16
    seq_len = 8
    embed_size = 32
    hidden_size = 32
    vocab_size = 48
    num_layers = 2
    feat_dim = 64

    key = jax.random.PRNGKey(0)
    k_img, k_cap, k_par = jax.random.split(key, 3)

    images = jax.random.normal(k_img, (batch, in_channels, spatial, spatial),
                               dtype=jnp.float32)
    captions = jax.random.randint(k_cap, (seq_len, batch), 0, vocab_size,
                                  dtype=jnp.int32)

    params = init_params(k_par,
                         in_channels=in_channels, feat_dim=feat_dim,
                         embed_size=embed_size, hidden_size=hidden_size,
                         vocab_size=vocab_size, num_layers=num_layers)
    prep = prepare_params(params)
    prep = jax.block_until_ready(prep)   # weight pad/cast done once, up front

    fwd = jax.jit(functools.partial(cnn_to_rnn_forward, vocab_size=vocab_size))
    outputs = jax.block_until_ready(fwd(images, captions, prep))

    assert outputs.shape == (seq_len + 1, batch, vocab_size), outputs.shape
    assert bool(jnp.all(jnp.isfinite(outputs)))
    print("KERNEL_OK")
</pallas_src>

<mosaic_0001>
module attributes {stable_mosaic.version = 11 : i64} {
  func.func @_linear_kernel(%arg0: i32, %arg1: i32, %arg2: i32, %arg3: memref<8x128xbf16, #tpu.memory_space<vmem>>, %arg4: memref<128x128xbf16, #tpu.memory_space<vmem>>, %arg5: memref<1x128xf32, #tpu.memory_space<vmem>>, %arg6: memref<8x128xbf16, #tpu.memory_space<vmem>>, %arg7: memref<8x128xf32, #tpu.memory_space<vmem>>) attributes {dimension_semantics = [#tpu.dimension_semantics<parallel>, #tpu.dimension_semantics<parallel>, #tpu.dimension_semantics<arbitrary>], iteration_bounds = array<i64: 1, 1, 1>, scalar_prefetch = 0 : i64, scratch_operands = 1 : i64, tpu.core_type = #tpu.core_type<tc>, window_params = [{transform_indices = @transform_0, window_bounds = array<i64: 8, 128>}, {transform_indices = @transform_1, window_bounds = array<i64: 128, 128>}, {transform_indices = @transform_2, window_bounds = array<i64: 1, 128>}, {transform_indices = @transform_3, window_bounds = array<i64: 8, 128>}]} {
    %c0_i32 = arith.constant 0 : i32
    %0 = arith.cmpi eq, %arg2, %c0_i32 : i32
    %1 = arith.extui %0 : i1 to i32
    %c0_i32_0 = arith.constant 0 : i32
    %2 = arith.cmpi ne, %1, %c0_i32_0 : i32
    scf.if %2 {
      %cst_10 = arith.constant 0.000000e+00 : f32
      %12 = vector.broadcast %cst_10 : f32 to vector<8x128xf32>
      %c0_11 = arith.constant 0 : index
      %c0_12 = arith.constant 0 : index
      %13 = vector.load %arg7[%c0_11, %c0_12] : memref<8x128xf32, #tpu.memory_space<vmem>>, vector<8x128xf32>
      tpu.vector_store %arg7[%c0_11, %c0_12], %12 {strides = array<i32>} : memref<8x128xf32, #tpu.memory_space<vmem>>, vector<8x128xf32>,
    } else {
    }
    %c0 = arith.constant 0 : index
    %c0_1 = arith.constant 0 : index
    %3 = vector.load %arg7[%c0, %c0_1] : memref<8x128xf32, #tpu.memory_space<vmem>>, vector<8x128xf32>
    %c0_2 = arith.constant 0 : index
    %c0_3 = arith.constant 0 : index
    %4 = vector.load %arg3[%c0_2, %c0_3] : memref<8x128xbf16, #tpu.memory_space<vmem>>, vector<8x128xbf16>
    %c0_4 = arith.constant 0 : index
    %c0_5 = arith.constant 0 : index
    %5 = vector.load %arg4[%c0_4, %c0_5] : memref<128x128xbf16, #tpu.memory_space<vmem>>, vector<128x128xbf16>
    %cst = arith.constant dense<0.000000e+00> : vector<8x128xf32>
    %6 = tpu.matmul %4, %5, %cst {dimension_numbers = #tpu.dot_dimension_numbers<[1], [0], [0], [1], [0, 0, 1, 1], [], []>} : vector<8x128xbf16>, vector<128x128xbf16>, vector<8x128xf32> -> vector<8x128xf32>
    %7 = arith.addf %3, %6 : vector<8x128xf32>
    %c0_6 = arith.constant 0 : index
    %c0_7 = arith.constant 0 : index
    %8 = vector.load %arg7[%c0_6, %c0_7] : memref<8x128xf32, #tpu.memory_space<vmem>>, vector<8x128xf32>
    tpu.vector_store %arg7[%c0_6, %c0_7], %7 {strides = array<i32>} : memref<8x128xf32, #tpu.memory_space<vmem>>, vector<8x128xf32>,
    %c0_i32_8 = arith.constant 0 : i32
    %9 = arith.cmpi eq, %arg2, %c0_i32_8 : i32
    %10 = arith.extui %9 : i1 to i32
    %c0_i32_9 = arith.constant 0 : i32
    %11 = arith.cmpi ne, %10, %c0_i32_9 : i32
    scf.if %11 {
      %c0_10 = arith.constant 0 : index
      %c0_11 = arith.constant 0 : index
      %12 = vector.load %arg7[%c0_10, %c0_11] : memref<8x128xf32, #tpu.memory_space<vmem>>, vector<8x128xf32>
      %c0_12 = arith.constant 0 : index
      %c0_13 = arith.constant 0 : index
      %13 = vector.load %arg5[%c0_12, %c0_13] : memref<1x128xf32, #tpu.memory_space<vmem>>, vector<1x128xf32>
      %14 = vector.broadcast %13 : vector<1x128xf32> to vector<8x128xf32>
      %15 = arith.addf %12, %14 : vector<8x128xf32>
      %cst_14 = arith.constant 0.000000e+00 : f32
      %16 = vector.broadcast %cst_14 : f32 to vector<8x128xf32>
      %17 = arith.maximumf %15, %16 : vector<8x128xf32>
      %18 = arith.truncf %17 : vector<8x128xf32> to vector<8x128xbf16>
      %c0_15 = arith.constant 0 : index
      %c0_16 = arith.constant 0 : index
      %19 = vector.load %arg6[%c0_15, %c0_16] : memref<8x128xbf16, #tpu.memory_space<vmem>>, vector<8x128xbf16>
      tpu.vector_store %arg6[%c0_15, %c0_16], %18 {strides = array<i32>} : memref<8x128xbf16, #tpu.memory_space<vmem>>, vector<8x128xbf16>,
    } else {
    }
    return
  }
  func.func @transform_0(%arg0: i32, %arg1: i32, %arg2: i32) -> (i32, i32) {
    %c0_i32 = arith.constant 0 : i32
    return %arg0, %arg2 : i32, i32
  }
  func.func @transform_1(%arg0: i32, %arg1: i32, %arg2: i32) -> (i32, i32) {
    %c0_i32 = arith.constant 0 : i32
    return %arg2, %arg1 : i32, i32
  }
  func.func @transform_2(%arg0: i32, %arg1: i32, %arg2: i32) -> (i32, i32) {
    %c0_i32 = arith.constant 0 : i32
    %c0_i32_0 = arith.constant 0 : i32
    return %c0_i32, %arg1 : i32, i32
  }
  func.func @transform_3(%arg0: i32, %arg1: i32, %arg2: i32) -> (i32, i32) {
    %c0_i32 = arith.constant 0 : i32
    return %arg0, %arg1 : i32, i32
  }
}

module attributes {stable_mosaic.version = 11 : i64} {
  func.func @_linear_kernel(%arg0: i32, %arg1: i32, %arg2: i32, %arg3: memref<72x128xbf16, #tpu.memory_space<vmem>>, %arg4: memref<128x512xbf16, #tpu.memory_space<vmem>>, %arg5: memref<1x512xf32, #tpu.memory_space<vmem>>, %arg6: memref<72x512xbf16, #tpu.memory_space<vmem>>, %arg7: memref<72x512xf32, #tpu.memory_space<vmem>>) attributes {dimension_semantics = [#tpu.dimension_semantics<parallel>, #tpu.dimension_semantics<parallel>, #tpu.dimension_semantics<arbitrary>], iteration_bounds = array<i64: 1, 1, 1>, scalar_prefetch = 0 : i64, scratch_operands = 1 : i64, tpu.core_type = #tpu.core_type<tc>, window_params = [{transform_indices = @transform_0, window_bounds = array<i64: 72, 128>}, {transform_indices = @transform_1, window_bounds = array<i64: 128, 512>}, {transform_indices = @transform_2, window_bounds = array<i64: 1, 512>}, {transform_indices = @transform_3, window_bounds = array<i64: 72, 512>}]} {
    %c0_i32 = arith.constant 0 : i32
    %0 = arith.cmpi eq, %arg2, %c0_i32 : i32
    %1 = arith.extui %0 : i1 to i32
    %c0_i32_0 = arith.constant 0 : i32
    %2 = arith.cmpi ne, %1, %c0_i32_0 : i32
    scf.if %2 {
      %cst_10 = arith.constant 0.000000e+00 : f32
      %12 = vector.broadcast %cst_10 : f32 to vector<72x512xf32>
      %c0_11 = arith.constant 0 : index
      %c0_12 = arith.constant 0 : index
      %13 = vector.load %arg7[%c0_11, %c0_12] : memref<72x512xf32, #tpu.memory_space<vmem>>, vector<72x512xf32>
      tpu.vector_store %arg7[%c0_11, %c0_12], %12 {strides = array<i32>} : memref<72x512xf32, #tpu.memory_space<vmem>>, vector<72x512xf32>,
    } else {
    }
    %c0 = arith.constant 0 : index
    %c0_1 = arith.constant 0 : index
    %3 = vector.load %arg7[%c0, %c0_1] : memref<72x512xf32, #tpu.memory_space<vmem>>, vector<72x512xf32>
    %c0_2 = arith.constant 0 : index
    %c0_3 = arith.constant 0 : index
    %4 = vector.load %arg3[%c0_2, %c0_3] : memref<72x128xbf16, #tpu.memory_space<vmem>>, vector<72x128xbf16>
    %c0_4 = arith.constant 0 : index
    %c0_5 = arith.constant 0 : index
    %5 = vector.load %arg4[%c0_4, %c0_5] : memref<128x512xbf16, #tpu.memory_space<vmem>>, vector<128x512xbf16>
    %cst = arith.constant dense<0.000000e+00> : vector<72x512xf32>
    %6 = tpu.matmul %4, %5, %cst {dimension_numbers = #tpu.dot_dimension_numbers<[1], [0], [0], [1], [0, 0, 1, 1], [], []>} : vector<72x128xbf16>, vector<128x512xbf16>, vector<72x512xf32> -> vector<72x512xf32>
    %7 = arith.addf %3, %6 : vector<72x512xf32>
    %c0_6 = arith.constant 0 : index
    %c0_7 = arith.constant 0 : index
    %8 = vector.load %arg7[%c0_6, %c0_7] : memref<72x512xf32, #tpu.memory_space<vmem>>, vector<72x512xf32>
    tpu.vector_store %arg7[%c0_6, %c0_7], %7 {strides = array<i32>} : memref<72x512xf32, #tpu.memory_space<vmem>>, vector<72x512xf32>,
    %c0_i32_8 = arith.constant 0 : i32
    %9 = arith.cmpi eq, %arg2, %c0_i32_8 : i32
    %10 = arith.extui %9 : i1 to i32
    %c0_i32_9 = arith.constant 0 : i32
    %11 = arith.cmpi ne, %10, %c0_i32_9 : i32
    scf.if %11 {
      %c0_10 = arith.constant 0 : index
      %c0_11 = arith.constant 0 : index
      %12 = vector.load %arg7[%c0_10, %c0_11] : memref<72x512xf32, #tpu.memory_space<vmem>>, vector<72x512xf32>
      %c0_12 = arith.constant 0 : index
      %c0_13 = arith.constant 0 : index
      %13 = vector.load %arg5[%c0_12, %c0_13] : memref<1x512xf32, #tpu.memory_space<vmem>>, vector<1x512xf32>
      %14 = vector.broadcast %13 : vector<1x512xf32> to vector<72x512xf32>
      %15 = arith.addf %12, %14 : vector<72x512xf32>
      %16 = arith.truncf %15 : vector<72x512xf32> to vector<72x512xbf16>
      %c0_14 = arith.constant 0 : index
      %c0_15 = arith.constant 0 : index
      %17 = vector.load %arg6[%c0_14, %c0_15] : memref<72x512xbf16, #tpu.memory_space<vmem>>, vector<72x512xbf16>
      tpu.vector_store %arg6[%c0_14, %c0_15], %16 {strides = array<i32>} : memref<72x512xbf16, #tpu.memory_space<vmem>>, vector<72x512xbf16>,
    } else {
    }
    return
  }
  func.func @transform_0(%arg0: i32, %arg1: i32, %arg2: i32) -> (i32, i32) {
    %c0_i32 = arith.constant 0 : i32
    return %arg0, %arg2 : i32, i32
  }
  func.func @transform_1(%arg0: i32, %arg1: i32, %arg2: i32) -> (i32, i32) {
    %c0_i32 = arith.constant 0 : i32
    return %arg2, %arg1 : i32, i32
  }
  func.func @transform_2(%arg0: i32, %arg1: i32, %arg2: i32) -> (i32, i32) {
    %c0_i32 = arith.constant 0 : i32
    %c0_i32_0 = arith.constant 0 : i32
    return %c0_i32, %arg1 : i32, i32
  }
  func.func @transform_3(%arg0: i32, %arg1: i32, %arg2: i32) -> (i32, i32) {
    %c0_i32 = arith.constant 0 : i32
    return %arg0, %arg1 : i32, i32
  }
}

module attributes {stable_mosaic.version = 11 : i64} {
  func.func @_linear_kernel(%arg0: i32, %arg1: i32, %arg2: i32, %arg3: memref<72x128xbf16, #tpu.memory_space<vmem>>, %arg4: memref<128x128xbf16, #tpu.memory_space<vmem>>, %arg5: memref<1x128xf32, #tpu.memory_space<vmem>>, %arg6: memref<72x128xf32, #tpu.memory_space<vmem>>, %arg7: memref<72x128xf32, #tpu.memory_space<vmem>>) attributes {dimension_semantics = [#tpu.dimension_semantics<parallel>, #tpu.dimension_semantics<parallel>, #tpu.dimension_semantics<arbitrary>], iteration_bounds = array<i64: 1, 1, 1>, scalar_prefetch = 0 : i64, scratch_operands = 1 : i64, tpu.core_type = #tpu.core_type<tc>, window_params = [{transform_indices = @transform_0, window_bounds = array<i64: 72, 128>}, {transform_indices = @transform_1, window_bounds = array<i64: 128, 128>}, {transform_indices = @transform_2, window_bounds = array<i64: 1, 128>}, {transform_indices = @transform_3, window_bounds = array<i64: 72, 128>}]} {
    %c0_i32 = arith.constant 0 : i32
    %0 = arith.cmpi eq, %arg2, %c0_i32 : i32
    %1 = arith.extui %0 : i1 to i32
    %c0_i32_0 = arith.constant 0 : i32
    %2 = arith.cmpi ne, %1, %c0_i32_0 : i32
    scf.if %2 {
      %cst_10 = arith.constant 0.000000e+00 : f32
      %12 = vector.broadcast %cst_10 : f32 to vector<72x128xf32>
      %c0_11 = arith.constant 0 : index
      %c0_12 = arith.constant 0 : index
      %13 = vector.load %arg7[%c0_11, %c0_12] : memref<72x128xf32, #tpu.memory_space<vmem>>, vector<72x128xf32>
      tpu.vector_store %arg7[%c0_11, %c0_12], %12 {strides = array<i32>} : memref<72x128xf32, #tpu.memory_space<vmem>>, vector<72x128xf32>,
    } else {
    }
    %c0 = arith.constant 0 : index
    %c0_1 = arith.constant 0 : index
    %3 = vector.load %arg7[%c0, %c0_1] : memref<72x128xf32, #tpu.memory_space<vmem>>, vector<72x128xf32>
    %c0_2 = arith.constant 0 : index
    %c0_3 = arith.constant 0 : index
    %4 = vector.load %arg3[%c0_2, %c0_3] : memref<72x128xbf16, #tpu.memory_space<vmem>>, vector<72x128xbf16>
    %c0_4 = arith.constant 0 : index
    %c0_5 = arith.constant 0 : index
    %5 = vector.load %arg4[%c0_4, %c0_5] : memref<128x128xbf16, #tpu.memory_space<vmem>>, vector<128x128xbf16>
    %cst = arith.constant dense<0.000000e+00> : vector<72x128xf32>
    %6 = tpu.matmul %4, %5, %cst {dimension_numbers = #tpu.dot_dimension_numbers<[1], [0], [0], [1], [0, 0, 1, 1], [], []>} : vector<72x128xbf16>, vector<128x128xbf16>, vector<72x128xf32> -> vector<72x128xf32>
    %7 = arith.addf %3, %6 : vector<72x128xf32>
    %c0_6 = arith.constant 0 : index
    %c0_7 = arith.constant 0 : index
    %8 = vector.load %arg7[%c0_6, %c0_7] : memref<72x128xf32, #tpu.memory_space<vmem>>, vector<72x128xf32>
    tpu.vector_store %arg7[%c0_6, %c0_7], %7 {strides = array<i32>} : memref<72x128xf32, #tpu.memory_space<vmem>>, vector<72x128xf32>,
    %c0_i32_8 = arith.constant 0 : i32
    %9 = arith.cmpi eq, %arg2, %c0_i32_8 : i32
    %10 = arith.extui %9 : i1 to i32
    %c0_i32_9 = arith.constant 0 : i32
    %11 = arith.cmpi ne, %10, %c0_i32_9 : i32
    scf.if %11 {
      %c0_10 = arith.constant 0 : index
      %c0_11 = arith.constant 0 : index
      %12 = vector.load %arg7[%c0_10, %c0_11] : memref<72x128xf32, #tpu.memory_space<vmem>>, vector<72x128xf32>
      %c0_12 = arith.constant 0 : index
      %c0_13 = arith.constant 0 : index
      %13 = vector.load %arg5[%c0_12, %c0_13] : memref<1x128xf32, #tpu.memory_space<vmem>>, vector<1x128xf32>
      %14 = vector.broadcast %13 : vector<1x128xf32> to vector<72x128xf32>
      %15 = arith.addf %12, %14 : vector<72x128xf32>
      %c0_14 = arith.constant 0 : index
      %c0_15 = arith.constant 0 : index
      %16 = vector.load %arg6[%c0_14, %c0_15] : memref<72x128xf32, #tpu.memory_space<vmem>>, vector<72x128xf32>
      tpu.vector_store %arg6[%c0_14, %c0_15], %15 {strides = array<i32>} : memref<72x128xf32, #tpu.memory_space<vmem>>, vector<72x128xf32>,
    } else {
    }
    return
  }
  func.func @transform_0(%arg0: i32, %arg1: i32, %arg2: i32) -> (i32, i32) {
    %c0_i32 = arith.constant 0 : i32
    return %arg0, %arg2 : i32, i32
  }
  func.func @transform_1(%arg0: i32, %arg1: i32, %arg2: i32) -> (i32, i32) {
    %c0_i32 = arith.constant 0 : i32
    return %arg2, %arg1 : i32, i32
  }
  func.func @transform_2(%arg0: i32, %arg1: i32, %arg2: i32) -> (i32, i32) {
    %c0_i32 = arith.constant 0 : i32
    %c0_i32_0 = arith.constant 0 : i32
    return %c0_i32, %arg1 : i32, i32
  }
  func.func @transform_3(%arg0: i32, %arg1: i32, %arg2: i32) -> (i32, i32) {
    %c0_i32 = arith.constant 0 : i32
    return %arg0, %arg1 : i32, i32
  }
}

module attributes {stable_mosaic.version = 11 : i64} {
  func.func @_lstm_recurrence_kernel(%arg0: i32, %arg1: i32, %arg2: memref<3x8x512xbf16, #tpu.memory_space<vmem>>, %arg3: memref<128x512xbf16, #tpu.memory_space<any>>, %arg4: memref<3x8x128xbf16, #tpu.memory_space<vmem>>, %arg5: memref<128x512xbf16, #tpu.memory_space<vmem>>, %arg6: memref<!tpu.dma_semaphore, #tpu.memory_space<semaphore_mem>>, %arg7: memref<8x128xf32, #tpu.memory_space<vmem>>, %arg8: memref<8x128xf32, #tpu.memory_space<vmem>>) attributes {dimension_semantics = [#tpu.dimension_semantics<parallel>, #tpu.dimension_semantics<arbitrary>], iteration_bounds = array<i64: 1, 3>, scalar_prefetch = 0 : i64, scratch_operands = 4 : i64, tpu.core_type = #tpu.core_type<tc>, window_params = [{transform_indices = @transform_0, window_bounds = array<i64: 3, 8, 512>}, {}, {transform_indices = @transform_2, window_bounds = array<i64: 3, 8, 128>}]} {
    %c0_i32 = arith.constant 0 : i32
    %0 = arith.cmpi eq, %arg1, %c0_i32 : i32
    %1 = arith.extui %0 : i1 to i32
    %c0_i32_0 = arith.constant 0 : i32
    %2 = arith.cmpi ne, %1, %c0_i32_0 : i32
    scf.if %2 {
      tpu.enqueue_dma source(%arg3 : memref<128x512xbf16, #tpu.memory_space<any>>) target(%arg5 : memref<128x512xbf16, #tpu.memory_space<vmem>>) target_semaphore(%arg6 : memref<!tpu.dma_semaphore, #tpu.memory_space<semaphore_mem>>)
      %cst_34 = arith.constant 0.000000e+00 : f32
      %119 = vector.broadcast %cst_34 : f32 to vector<8x128xf32>
      %c0_35 = arith.constant 0 : index
      %c0_36 = arith.constant 0 : index
      %120 = vector.load %arg7[%c0_35, %c0_36] : memref<8x128xf32, #tpu.memory_space<vmem>>, vector<8x128xf32>
      tpu.vector_store %arg7[%c0_35, %c0_36], %119 {strides = array<i32>} : memref<8x128xf32, #tpu.memory_space<vmem>>, vector<8x128xf32>,
      %cst_37 = arith.constant 0.000000e+00 : f32
      %121 = vector.broadcast %cst_37 : f32 to vector<8x128xf32>
      %c0_38 = arith.constant 0 : index
      %c0_39 = arith.constant 0 : index
      %122 = vector.load %arg8[%c0_38, %c0_39] : memref<8x128xf32, #tpu.memory_space<vmem>>, vector<8x128xf32>
      tpu.vector_store %arg8[%c0_38, %c0_39], %121 {strides = array<i32>} : memref<8x128xf32, #tpu.memory_space<vmem>>, vector<8x128xf32>,
      tpu.wait_dma2 semaphore(%arg6 : memref<!tpu.dma_semaphore, #tpu.memory_space<semaphore_mem>>) src(%arg3 : memref<128x512xbf16, #tpu.memory_space<any>>) dst(%arg5 : memref<128x512xbf16, #tpu.memory_space<vmem>>)
    } else {
    }
    %c0 = arith.constant 0 : index
    %c0_1 = arith.constant 0 : index
    %3 = vector.load %arg5[%c0, %c0_1] : memref<128x512xbf16, #tpu.memory_space<vmem>>, vector<128x512xbf16>
    %c0_2 = arith.constant 0 : index
    %c0_3 = arith.constant 0 : index
    %4 = vector.load %arg7[%c0_2, %c0_3] : memref<8x128xf32, #tpu.memory_space<vmem>>, vector<8x128xf32>
    %c0_4 = arith.constant 0 : index
    %c0_5 = arith.constant 0 : index
    %5 = vector.load %arg8[%c0_4, %c0_5] : memref<8x128xf32, #tpu.memory_space<vmem>>, vector<8x128xf32>
    %c0_i32_6 = arith.constant 0 : i32
    %6 = arith.index_cast %c0_i32_6 : i32 to index
    %c0_7 = arith.constant 0 : index
    %c0_8 = arith.constant 0 : index
    %7 = vector.load %arg2[%6, %c0_7, %c0_8] : memref<3x8x512xbf16, #tpu.memory_space<vmem>>, vector<1x8x512xbf16>
    %8 = vector.shape_cast %7 : vector<1x8x512xbf16> to vector<8x512xbf16>
    %9 = arith.extf %8 : vector<8x512xbf16> to vector<8x512xf32>
    %10 = arith.truncf %4 : vector<8x128xf32> to vector<8x128xbf16>
    %cst = arith.constant dense<0.000000e+00> : vector<8x512xf32>
    %11 = tpu.matmul %10, %3, %cst {dimension_numbers = #tpu.dot_dimension_numbers<[1], [0], [0], [1], [0, 0, 1, 1], [], []>} : vector<8x128xbf16>, vector<128x512xbf16>, vector<8x512xf32> -> vector<8x512xf32>
    %12 = arith.addf %9, %11 : vector<8x512xf32>
    %13 = vector.extract_strided_slice %12 {offsets = [0, 0], sizes = [8, 128], strides = [1, 1]} : vector<8x512xf32> to vector<8x128xf32>
    %14 = arith.negf %13 : vector<8x128xf32>
    %15 = math.exp %14 : vector<8x128xf32>
    %cst_9 = arith.constant 1.000000e+00 : f32
    %16 = vector.broadcast %cst_9 : f32 to vector<8x128xf32>
    %17 = arith.addf %16, %15 : vector<8x128xf32>
    %18 = arith.divf %16, %17 : vector<8x128xf32>
    %19 = vector.extract_strided_slice %12 {offsets = [0, 128], sizes = [8, 128], strides = [1, 1]} : vector<8x512xf32> to vector<8x128xf32>
    %20 = arith.negf %19 : vector<8x128xf32>
    %21 = math.exp %20 : vector<8x128xf32>
    %cst_10 = arith.constant 1.000000e+00 : f32
    %22 = vector.broadcast %cst_10 : f32 to vector<8x128xf32>
    %23 = arith.addf %22, %21 : vector<8x128xf32>
    %24 = arith.divf %22, %23 : vector<8x128xf32>
    %25 = vector.extract_strided_slice %12 {offsets = [0, 256], sizes = [8, 128], strides = [1, 1]} : vector<8x512xf32> to vector<8x128xf32>
    %26 = math.tanh %25 : vector<8x128xf32>
    %27 = vector.extract_strided_slice %12 {offsets = [0, 384], sizes = [8, 128], strides = [1, 1]} : vector<8x512xf32> to vector<8x128xf32>
    %28 = arith.negf %27 : vector<8x128xf32>
    %29 = math.exp %28 : vector<8x128xf32>
    %cst_11 = arith.constant 1.000000e+00 : f32
    %30 = vector.broadcast %cst_11 : f32 to vector<8x128xf32>
    %31 = arith.addf %30, %29 : vector<8x128xf32>
    %32 = arith.divf %30, %31 : vector<8x128xf32>
    %33 = arith.mulf %24, %5 : vector<8x128xf32>
    %34 = arith.mulf %18, %26 : vector<8x128xf32>
    %35 = arith.addf %33, %34 : vector<8x128xf32>
    %36 = math.tanh %35 : vector<8x128xf32>
    %37 = arith.mulf %32, %36 : vector<8x128xf32>
    %38 = arith.truncf %37 : vector<8x128xf32> to vector<8x128xbf16>
    %39 = arith.index_cast %c0_i32_6 : i32 to index
    %c0_12 = arith.constant 0 : index
    %c0_13 = arith.constant 0 : index
    %40 = vector.load %arg4[%39, %c0_12, %c0_13] : memref<3x8x128xbf16, #tpu.memory_space<vmem>>, vector<1x8x128xbf16>
    %41 = vector.shape_cast %40 : vector<1x8x128xbf16> to vector<8x128xbf16>
    %42 = vector.shape_cast %38 : vector<8x128xbf16> to vector<1x8x128xbf16>
    tpu.vector_store %arg4[%39, %c0_12, %c0_13], %42 {strides = array<i32>} : memref<3x8x128xbf16, #tpu.memory_space<vmem>>, vector<1x8x128xbf16>,
    %c1_i32 = arith.constant 1 : i32
    %43 = arith.index_cast %c1_i32 : i32 to index
    %c0_14 = arith.constant 0 : index
    %c0_15 = arith.constant 0 : index
    %44 = vector.load %arg2[%43, %c0_14, %c0_15] : memref<3x8x512xbf16, #tpu.memory_space<vmem>>, vector<1x8x512xbf16>
    %45 = vector.shape_cast %44 : vector<1x8x512xbf16> to vector<8x512xbf16>
    %46 = arith.extf %45 : vector<8x512xbf16> to vector<8x512xf32>
    %47 = arith.truncf %37 : vector<8x128xf32> to vector<8x128xbf16>
    %cst_16 = arith.constant dense<0.000000e+00> : vector<8x512xf32>
    %48 = tpu.matmul %47, %3, %cst_16 {dimension_numbers = #tpu.dot_dimension_numbers<[1], [0], [0], [1], [0, 0, 1, 1], [], []>} : vector<8x128xbf16>, vector<128x512xbf16>, vector<8x512xf32> -> vector<8x512xf32>
    %49 = arith.addf %46, %48 : vector<8x512xf32>
    %50 = vector.extract_strided_slice %49 {offsets = [0, 0], sizes = [8, 128], strides = [1, 1]} : vector<8x512xf32> to vector<8x128xf32>
    %51 = arith.negf %50 : vector<8x128xf32>
    %52 = math.exp %51 : vector<8x128xf32>
    %cst_17 = arith.constant 1.000000e+00 : f32
    %53 = vector.broadcast %cst_17 : f32 to vector<8x128xf32>
    %54 = arith.addf %53, %52 : vector<8x128xf32>
    %55 = arith.divf %53, %54 : vector<8x128xf32>
    %56 = vector.extract_strided_slice %49 {offsets = [0, 128], sizes = [8, 128], strides = [1, 1]} : vector<8x512xf32> to vector<8x128xf32>
    %57 = arith.negf %56 : vector<8x128xf32>
    %58 = math.exp %57 : vector<8x128xf32>
    %cst_18 = arith.constant 1.000000e+00 : f32
    %59 = vector.broadcast %cst_18 : f32 to vector<8x128xf32>
    %60 = arith.addf %59, %58 : vector<8x128xf32>
    %61 = arith.divf %59, %60 : vector<8x128xf32>
    %62 = vector.extract_strided_slice %49 {offsets = [0, 256], sizes = [8, 128], strides = [1, 1]} : vector<8x512xf32> to vector<8x128xf32>
    %63 = math.tanh %62 : vector<8x128xf32>
    %64 = vector.extract_strided_slice %49 {offsets = [0, 384], sizes = [8, 128], strides = [1, 1]} : vector<8x512xf32> to vector<8x128xf32>
    %65 = arith.negf %64 : vector<8x128xf32>
    %66 = math.exp %65 : vector<8x128xf32>
    %cst_19 = arith.constant 1.000000e+00 : f32
    %67 = vector.broadcast %cst_19 : f32 to vector<8x128xf32>
    %68 = arith.addf %67, %66 : vector<8x128xf32>
    %69 = arith.divf %67, %68 : vector<8x128xf32>
    %70 = arith.mulf %61, %35 : vector<8x128xf32>
    %71 = arith.mulf %55, %63 : vector<8x128xf32>
    %72 = arith.addf %70, %71 : vector<8x128xf32>
    %73 = math.tanh %72 : vector<8x128xf32>
    %74 = arith.mulf %69, %73 : vector<8x128xf32>
    %75 = arith.truncf %74 : vector<8x128xf32> to vector<8x128xbf16>
    %76 = arith.index_cast %c1_i32 : i32 to index
    %c0_20 = arith.constant 0 : index
    %c0_21 = arith.constant 0 : index
    %77 = vector.load %arg4[%76, %c0_20, %c0_21] : memref<3x8x128xbf16, #tpu.memory_space<vmem>>, vector<1x8x128xbf16>
    %78 = vector.shape_cast %77 : vector<1x8x128xbf16> to vector<8x128xbf16>
    %79 = vector.shape_cast %75 : vector<8x128xbf16> to vector<1x8x128xbf16>
    tpu.vector_store %arg4[%76, %c0_20, %c0_21], %79 {strides = array<i32>} : memref<3x8x128xbf16, #tpu.memory_space<vmem>>, vector<1x8x128xbf16>,
    %c2_i32 = arith.constant 2 : i32
    %80 = arith.index_cast %c2_i32 : i32 to index
    %c0_22 = arith.constant 0 : index
    %c0_23 = arith.constant 0 : index
    %81 = vector.load %arg2[%80, %c0_22, %c0_23] : memref<3x8x512xbf16, #tpu.memory_space<vmem>>, vector<1x8x512xbf16>
    %82 = vector.shape_cast %81 : vector<1x8x512xbf16> to vector<8x512xbf16>
    %83 = arith.extf %82 : vector<8x512xbf16> to vector<8x512xf32>
    %84 = arith.truncf %74 : vector<8x128xf32> to vector<8x128xbf16>
    %cst_24 = arith.constant dense<0.000000e+00> : vector<8x512xf32>
    %85 = tpu.matmul %84, %3, %cst_24 {dimension_numbers = #tpu.dot_dimension_numbers<[1], [0], [0], [1], [0, 0, 1, 1], [], []>} : vector<8x128xbf16>, vector<128x512xbf16>, vector<8x512xf32> -> vector<8x512xf32>
    %86 = arith.addf %83, %85 : vector<8x512xf32>
    %87 = vector.extract_strided_slice %86 {offsets = [0, 0], sizes = [8, 128], strides = [1, 1]} : vector<8x512xf32> to vector<8x128xf32>
    %88 = arith.negf %87 : vector<8x128xf32>
    %89 = math.exp %88 : vector<8x128xf32>
    %cst_25 = arith.constant 1.000000e+00 : f32
    %90 = vector.broadcast %cst_25 : f32 to vector<8x128xf32>
    %91 = arith.addf %90, %89 : vector<8x128xf32>
    %92 = arith.divf %90, %91 : vector<8x128xf32>
    %93 = vector.extract_strided_slice %86 {offsets = [0, 128], sizes = [8, 128], strides = [1, 1]} : vector<8x512xf32> to vector<8x128xf32>
    %94 = arith.negf %93 : vector<8x128xf32>
    %95 = math.exp %94 : vector<8x128xf32>
    %cst_26 = arith.constant 1.000000e+00 : f32
    %96 = vector.broadcast %cst_26 : f32 to vector<8x128xf32>
    %97 = arith.addf %96, %95 : vector<8x128xf32>
    %98 = arith.divf %96, %97 : vector<8x128xf32>
    %99 = vector.extract_strided_slice %86 {offsets = [0, 256], sizes = [8, 128], strides = [1, 1]} : vector<8x512xf32> to vector<8x128xf32>
    %100 = math.tanh %99 : vector<8x128xf32>
    %101 = vector.extract_strided_slice %86 {offsets = [0, 384], sizes = [8, 128], strides = [1, 1]} : vector<8x512xf32> to vector<8x128xf32>
    %102 = arith.negf %101 : vector<8x128xf32>
    %103 = math.exp %102 : vector<8x128xf32>
    %cst_27 = arith.constant 1.000000e+00 : f32
    %104 = vector.broadcast %cst_27 : f32 to vector<8x128xf32>
    %105 = arith.addf %104, %103 : vector<8x128xf32>
    %106 = arith.divf %104, %105 : vector<8x128xf32>
    %107 = arith.mulf %98, %72 : vector<8x128xf32>
    %108 = arith.mulf %92, %100 : vector<8x128xf32>
    %109 = arith.addf %107, %108 : vector<8x128xf32>
    %110 = math.tanh %109 : vector<8x128xf32>
    %111 = arith.mulf %106, %110 : vector<8x128xf32>
    %112 = arith.truncf %111 : vector<8x128xf32> to vector<8x128xbf16>
    %113 = arith.index_cast %c2_i32 : i32 to index
    %c0_28 = arith.constant 0 : index
    %c0_29 = arith.constant 0 : index
    %114 = vector.load %arg4[%113, %c0_28, %c0_29] : memref<3x8x128xbf16, #tpu.memory_space<vmem>>, vector<1x8x128xbf16>
    %115 = vector.shape_cast %114 : vector<1x8x128xbf16> to vector<8x128xbf16>
    %116 = vector.shape_cast %112 : vector<8x128xbf16> to vector<1x8x128xbf16>
    tpu.vector_store %arg4[%113, %c0_28, %c0_29], %116 {strides = array<i32>} : memref<3x8x128xbf16, #tpu.memory_space<vmem>>, vector<1x8x128xbf16>,
    %c3_i32 = arith.constant 3 : i32
    %c0_30 = arith.constant 0 : index
    %c0_31 = arith.constant 0 : index
    %117 = vector.load %arg7[%c0_30, %c0_31] : memref<8x128xf32, #tpu.memory_space<vmem>>, vector<8x128xf32>
    tpu.vector_store %arg7[%c0_30, %c0_31], %111 {strides = array<i32>} : memref<8x128xf32, #tpu.memory_space<vmem>>, vector<8x128xf32>,
    %c0_32 = arith.constant 0 : index
    %c0_33 = arith.constant 0 : index
    %118 = vector.load %arg8[%c0_32, %c0_33] : memref<8x128xf32, #tpu.memory_space<vmem>>, vector<8x128xf32>
    tpu.vector_store %arg8[%c0_32, %c0_33], %109 {strides = array<i32>} : memref<8x128xf32, #tpu.memory_space<vmem>>, vector<8x128xf32>,
    return
  }
  func.func @transform_0(%arg0: i32, %arg1: i32) -> (i32, i32, i32) {
    %c0_i32 = arith.constant 0 : i32
    %c0_i32_0 = arith.constant 0 : i32
    return %arg1, %arg0, %c0_i32 : i32, i32, i32
  }
  func.func @transform_2(%arg0: i32, %arg1: i32) -> (i32, i32, i32) {
    %c0_i32 = arith.constant 0 : i32
    %c0_i32_0 = arith.constant 0 : i32
    return %arg1, %arg0, %c0_i32 : i32, i32, i32
  }
}

</mosaic_0001>

<llo_original>
// kernel: cnn_to_rnn_forward.7
$region0: #{cnn_to_rnn_forward.7}
  #allocation0 [shape = 'u32[]', space=smem, size = 0x4, offset = 0x4, fixed_abs, tag = 'smem constant byte address 0x4 - core index']
  #allocation1 [shape = 'u32[144,128]{1,0:T(1,128)}', space=vmem, size = 0x12000, scoped, tag = 'internal scratch']
  #allocation2 [shape = 'f32[8,128]{1,0:T(8,128)}', space=vmem, size = 0x1000, scoped, tag = 'scratch operand']
  %s0 = inlined_call_operand.vmem [shape: bf16[8,128], index: 0, kind: input, shape index: {}]
  %s1 = inlined_call_operand.hbm [shape: bf16[128,128], index: 1, kind: input, shape index: {}]
  %s2 = inlined_call_operand.hbm [shape: f32[1,128], index: 2, kind: input, shape index: {}]
  %s3 = inlined_call_operand.vmem [shape: bf16[8,128], index: 3, kind: output, shape index: {}]
  %s4 = sld [smem:[#allocation0]]
  $region38: #{cnn_to_rnn_forward.7} parent=0
    _
  %s6 = ssub.s32 1, %s4
  %s7 = scalar_select 0, %s6, %s4
  $region1: #{cnn_to_rnn_forward.7} parent=0
    #allocation3 [shape = 'u8[32768]{0}', space=vmem, size = 0x8000, scoped, tag = 'input window, operand 1, single buffered']
    #allocation4 [shape = 's32[1]{0}', space=sflag, size = 0x4, scoped, tag = 'scoped memory for cnn_to_rnn_forward.7']
    #allocation5 [shape = 'u8[512]{0}', space=vmem, size = 0x400, scoped, tag = 'input window, operand 2, single buffered']
    #allocation6 [shape = 's32[1]{0}', space=sflag, size = 0x4, scoped, tag = 'scoped memory for cnn_to_rnn_forward.7']
    %8 = vsyncpa [#allocation4], 0
    %9 = vsyncpa [#allocation6], 0
    // Predicated region
    $region2: #{cnn_to_rnn_forward.7} parent=1 // pred_check
      _
    $region3: #{cnn_to_rnn_forward.7} parent=1 // pred_check_branch
      %11 = sbr.rel (0) target = $region5
    $region4: #{cnn_to_rnn_forward.7} parent=1 // pred_region
      _
    $region5: #{cnn_to_rnn_forward.7} parent=1 // pred_fallthru
      _
    // Predicated region
    $region6: #{cnn_to_rnn_forward.7} parent=1 // pred_check
      _
    $region7: #{cnn_to_rnn_forward.7} parent=1 // pred_check_branch
      %13 = sbr.rel (0) target = $region9
    $region8: #{cnn_to_rnn_forward.7} parent=1 // pred_region
      %s15 = ssub.s32 1024, 1024
      %16 = vsyncadd [#allocation4], %s15
      %s17 = sshll.u32 [#allocation3], 4
      %s18 = int_to_ptr.vmem [resolvable:$true] %s17
      %23 = dma.hbm_to_vmem [thread:$0]  %s1, 1024, %s18, [#allocation4], 64, 64, 4
    $region9: #{cnn_to_rnn_forward.7} parent=1 // pred_fallthru
      _
    // Predicated region
    $region10: #{cnn_to_rnn_forward.7} parent=1 // pred_check
      _
    $region11: #{cnn_to_rnn_forward.7} parent=1 // pred_check_branch
      %25 = sbr.rel (0) target = $region13
    $region12: #{cnn_to_rnn_forward.7} parent=1 // pred_region
      %s27 = ssub.s32 16, 16
      %28 = vsyncadd [#allocation6], %s27
      %s30 = sshll.u32 [#allocation5], 4
      %s31 = int_to_ptr.vmem [resolvable:$true] %s30
      %33 = dma.hbm_to_vmem [thread:$0]  %s2, 16, %s31, [#allocation6]
    $region13: #{cnn_to_rnn_forward.7} parent=1 // pred_fallthru
      _
    // Predicated region
    $region14: #{cnn_to_rnn_forward.7} parent=1 // pred_check
      _
    $region15: #{cnn_to_rnn_forward.7} parent=1 // pred_check_branch
      %35 = sbr.rel (0) target = $region17
    $region16: #{cnn_to_rnn_forward.7} parent=1 // pred_region
      %36 = dma.done [#allocation4], 1024
    $region17: #{cnn_to_rnn_forward.7} parent=1 // pred_fallthru
      _
    // Predicated region
    $region18: #{cnn_to_rnn_forward.7} parent=1 // pred_check
      _
    $region19: #{cnn_to_rnn_forward.7} parent=1 // pred_check_branch
      %38 = sbr.rel (0) target = $region21
    $region20: #{cnn_to_rnn_forward.7} parent=1 // pred_region
      %39 = dma.done [#allocation6], 16
    $region21: #{cnn_to_rnn_forward.7} parent=1 // pred_fallthru
      _
    %p41 = scmp.eq.s32.totalorder 0, 0
    // Predicated region
    $region22: #{cnn_to_rnn_forward.7} parent=1 // pred_check
      %p42 = pneg %p41
    $region23: #{cnn_to_rnn_forward.7} parent=1 // pred_check_branch
      %44 = sbr.rel (%p42) target = $region25
    $region24: #{cnn_to_rnn_forward.7} parent=1 // pred_region
      %45 = vst [vmem:[#allocation2] sm:$0xff] 0.0
    $region25: #{cnn_to_rnn_forward.7} parent=1 // pred_fallthru
      _
    %v46 = vld [vmem:[#allocation2] sm:$0xff]
    %v47 = vld [vmem:[%s0] sm:$0xf]
    %v48 = vld [vmem:[#allocation3] sm:$0xf]
    %v49 = vld [vmem:[#allocation3 + $0x4] sm:$0xf]
    %v50 = vld [vmem:[#allocation3 + $0x8] sm:$0xf]
    %v51 = vld [vmem:[#allocation3 + $0xc] sm:$0xf]
    %v52 = vld [vmem:[#allocation3 + $0x10] sm:$0xf]
    %v53 = vld [vmem:[#allocation3 + $0x14] sm:$0xf]
    %v54 = vld [vmem:[#allocation3 + $0x18] sm:$0xf]
    %v55 = vld [vmem:[#allocation3 + $0x1c] sm:$0xf]
    %v56 = vld [vmem:[#allocation3 + $0x20] sm:$0xf]
    %v57 = vld [vmem:[#allocation3 + $0x24] sm:$0xf]
    %v58 = vld [vmem:[#allocation3 + $0x28] sm:$0xf]
    %v59 = vld [vmem:[#allocation3 + $0x2c] sm:$0xf]
    %v60 = vld [vmem:[#allocation3 + $0x30] sm:$0xf]
    %v61 = vld [vmem:[#allocation3 + $0x34] sm:$0xf]
    %v62 = vld [vmem:[#allocation3 + $0x38] sm:$0xf]
    %v63 = vld [vmem:[#allocation3 + $0x3c] sm:$0xf]
    %v80 = vunpack.c.l.b16 %v48
    %v81 = vunpack.c.l.b16 %v49
    %v82 = vunpack.c.l.b16 %v50
    %v83 = vunpack.c.l.b16 %v51
    %v84 = vunpack.c.l.b16 %v52
    %v85 = vunpack.c.l.b16 %v53
    %v86 = vunpack.c.l.b16 %v54
    %v87 = vunpack.c.l.b16 %v55
    %v88 = vunpack.c.l.b16 %v56
    %v89 = vunpack.c.l.b16 %v57
    %v90 = vunpack.c.l.b16 %v58
    %v91 = vunpack.c.l.b16 %v59
    %v92 = vunpack.c.l.b16 %v60
    %v93 = vunpack.c.l.b16 %v61
    %v94 = vunpack.c.l.b16 %v62
    %v95 = vunpack.c.l.b16 %v63
    %v96 = vpack.c.b16 %v81, %v80
    %v97 = vpack.c.b16 %v83, %v82
    %v98 = vpack.c.b16 %v85, %v84
    %v99 = vpack.c.b16 %v87, %v86
    %v100 = vpack.c.b16 %v89, %v88
    %v101 = vpack.c.b16 %v91, %v90
    %v102 = vpack.c.b16 %v93, %v92
    %v103 = vpack.c.b16 %v95, %v94
    %112 = vmatprep.subr.bf16.mxu0 0
    %113 = vmatpush1.bf16.msra.mxu0 %v103
    %114 = vmatprep.subr.bf16.mxu0 0
    %115 = vmatpush1.bf16.msra.mxu0 %v102
    %116 = vmatprep.subr.bf16.mxu0 0
    %117 = vmatpush1.bf16.msra.mxu0 %v101
    %118 = vmatprep.subr.bf16.mxu0 0
    %119 = vmatpush1.bf16.msra.mxu0 %v100
    %120 = vmatprep.subr.bf16.mxu0 0
    %121 = vmatpush1.bf16.msra.mxu0 %v99
    %122 = vmatprep.subr.bf16.mxu0 0
    %123 = vmatpush1.bf16.msra.mxu0 %v98
    %124 = vmatprep.subr.bf16.mxu0 0
    %125 = vmatpush1.bf16.msra.mxu0 %v97
    %126 = vmatprep.subr.bf16.mxu0 0
    %127 = vmatpush1.bf16.msra.mxu0 %v96
    %128 = vmatprep.subr.bf16.mxu0 0
    %129 = vmatpush2.bf16.msra.mxu0 0
    %130 = vmatprep.subr.bf16.mxu0 0
    %131 = vmatpush2.bf16.msra.mxu0 0
    %132 = vmatprep.subr.bf16.mxu0 0
    %133 = vmatpush2.bf16.msra.mxu0 0
    %134 = vmatprep.subr.bf16.mxu0 0
    %135 = vmatpush2.bf16.msra.mxu0 0
    %136 = vmatprep.subr.bf16.mxu0 0
    %137 = vmatpush2.bf16.msra.mxu0 0
    %138 = vmatprep.subr.bf16.mxu0 0
    %139 = vmatpush2.bf16.msra.mxu0 0
    %140 = vmatprep.subr.bf16.mxu0 0
    %141 = vmatpush2.bf16.msra.mxu0 0
    %142 = vmatprep.subr.bf16.mxu0 0
    %143 = vmatpush2.bf16.msra.mxu0 0
    %144 = vmatprep.mubr.bf16.mxu0 0
    %145 = vmatmul.mubr.bf16.gmra.mxu0 %v47
    %v146 = vpop.f32.mrf.mxu0
    %v147 = vadd.f32 0.0, %v146
    %v148 = vpop.f32.mrf.mxu0
    %v149 = vpop.f32.mrf.mxu0
    %v150 = vpop.f32.mrf.mxu0
    %151 = vdwg.mxu0
    %v152 = vadd.f32 %v46, %v147
    %153 = vst [vmem:[#allocation2] sm:$0xff] %v152
    // Predicated region
    $region26: #{cnn_to_rnn_forward.7} parent=1 // pred_check
      %p154 = pneg %p41
    $region27: #{cnn_to_rnn_forward.7} parent=1 // pred_check_branch
      %156 = sbr.rel (%p154) target = $region29
    $region28: #{cnn_to_rnn_forward.7} parent=1 // pred_region
      %v157 = vld [vmem:[#allocation2] sm:$0xff]
      %v158 = vld [vmem:[#allocation5] sm:$0x1]
      %v160 = vlaneseq
      %v161 = vshrl.u32 %v160, 7
      %v162 = vsub.s32 0, %v161
      %v163 = vrot.slane %v158, %v162
      %v165 = vadd.f32 %v157, %v163
      %v166 = vmax.f32 %v165, 0.0
      %v167 = vpack.c.bf16 %v166, %v166
      %168 = vst [vmem:[%s3] sm:$0xf] %v167
    $region29: #{cnn_to_rnn_forward.7} parent=1 // pred_fallthru
      _
    // Predicated region
    $region30: #{cnn_to_rnn_forward.7} parent=1 // pred_check
      _
    $region31: #{cnn_to_rnn_forward.7} parent=1 // pred_check_branch
      %170 = sbr.rel (0) target = $region33
    $region32: #{cnn_to_rnn_forward.7} parent=1 // pred_region
      _
    $region33: #{cnn_to_rnn_forward.7} parent=1 // pred_fallthru
      _
    // Predicated region
    $region34: #{cnn_to_rnn_forward.7} parent=1 // pred_check
      _
    $region35: #{cnn_to_rnn_forward.7} parent=1 // pred_check_branch
      %172 = sbr.rel (0) target = $region37
    $region36: #{cnn_to_rnn_forward.7} parent=1 // pred_region
      _
    $region37: #{cnn_to_rnn_forward.7} parent=1 // pred_fallthru
      _
    %173 = vsyncpa [#allocation4], 1
    %174 = vsyncpa [#allocation6], 1

// kernel: cnn_to_rnn_forward.13
$region0: #{cnn_to_rnn_forward.13}
  #allocation0 [shape = 'u32[]', space=smem, size = 0x4, offset = 0x4, fixed_abs, tag = 'smem constant byte address 0x4 - core index']
  #allocation1 [shape = 'u32[144,128]{1,0:T(1,128)}', space=vmem, size = 0x12000, scoped, tag = 'internal scratch']
  #allocation2 [shape = 'f32[72,128]{1,0:T(8,128)}', space=vmem, size = 0x9000, scoped, tag = 'scratch operand']
  %s0 = inlined_call_operand.vmem [shape: bf16[72,128], index: 0, kind: input, shape index: {}]
  %s1 = inlined_call_operand.vmem [shape: bf16[128,128], index: 1, kind: input, shape index: {}]
  %s2 = inlined_call_operand.vmem [shape: f32[1,128], index: 2, kind: input, shape index: {}]
  %s3 = inlined_call_operand.vmem [shape: f32[72,128], index: 3, kind: output, shape index: {}]
  %s4 = sld [smem:[#allocation0]]
  $region30: #{cnn_to_rnn_forward.13} parent=0
    _
  %s6 = ssub.s32 1, %s4
  %s7 = scalar_select 0, %s6, %s4
  // Predicated region
  $region2: #{cnn_to_rnn_forward.13} parent=0 // pred_check
    _
  $region3: #{cnn_to_rnn_forward.13} parent=0 // pred_check_branch
    %9 = sbr.rel (0) target = $region5
  $region4: #{cnn_to_rnn_forward.13} parent=0 // pred_region
    _
  $region5: #{cnn_to_rnn_forward.13} parent=0 // pred_fallthru
    _
  // Predicated region
  $region6: #{cnn_to_rnn_forward.13} parent=0 // pred_check
    _
  $region7: #{cnn_to_rnn_forward.13} parent=0 // pred_check_branch
    %11 = sbr.rel (0) target = $region9
  $region8: #{cnn_to_rnn_forward.13} parent=0 // pred_region
    _
  $region9: #{cnn_to_rnn_forward.13} parent=0 // pred_fallthru
    _
  // Predicated region
  $region10: #{cnn_to_rnn_forward.13} parent=0 // pred_check
    _
  $region11: #{cnn_to_rnn_forward.13} parent=0 // pred_check_branch
    %13 = sbr.rel (0) target = $region13
  $region12: #{cnn_to_rnn_forward.13} parent=0 // pred_region
    _
  $region13: #{cnn_to_rnn_forward.13} parent=0 // pred_fallthru
    _
  %p15 = scmp.eq.s32.totalorder 0, 0
  // Predicated region
  $region14: #{cnn_to_rnn_forward.13} parent=0 // pred_check
    %p16 = pneg %p15
  $region15: #{cnn_to_rnn_forward.13} parent=0 // pred_check_branch
    %18 = sbr.rel (%p16) target = $region17
  $region16: #{cnn_to_rnn_forward.13} parent=0 // pred_region
    %19 = vst [vmem:[#allocation2] sm:$0xff] 0.0
    %20 = vst [vmem:[#allocation2 + $0x8] sm:$0xff] 0.0
    %21 = vst [vmem:[#allocation2 + $0x10] sm:$0xff] 0.0
    %22 = vst [vmem:[#allocation2 + $0x18] sm:$0xff] 0.0
    %23 = vst [vmem:[#allocation2 + $0x20] sm:$0xff] 0.0
    %24 = vst [vmem:[#allocation2 + $0x28] sm:$0xff] 0.0
    %25 = vst [vmem:[#allocation2 + $0x30] sm:$0xff] 0.0
    %26 = vst [vmem:[#allocation2 + $0x38] sm:$0xff] 0.0
    %27 = vst [vmem:[#allocation2 + $0x40] sm:$0xff] 0.0
  $region17: #{cnn_to_rnn_forward.13} parent=0 // pred_fallthru
    _
  %v28 = vld [vmem:[#allocation2] sm:$0xff]
  %v29 = vld [vmem:[#allocation2 + $0x8] sm:$0xff]
  %v30 = vld [vmem:[#allocation2 + $0x10] sm:$0xff]
  %v31 = vld [vmem:[#allocation2 + $0x18] sm:$0xff]
  %v32 = vld [vmem:[#allocation2 + $0x20] sm:$0xff]
  %v33 = vld [vmem:[#allocation2 + $0x28] sm:$0xff]
  %v34 = vld [vmem:[#allocation2 + $0x30] sm:$0xff]
  %v35 = vld [vmem:[#allocation2 + $0x38] sm:$0xff]
  %v36 = vld [vmem:[#allocation2 + $0x40] sm:$0xff]
  %v37 = vld [vmem:[%s0] sm:$0xf]
  %v38 = vld [vmem:[%s0 + $0x4] sm:$0xf]
  %v39 = vld [vmem:[%s0 + $0x8] sm:$0xf]
  %v40 = vld [vmem:[%s0 + $0xc] sm:$0xf]
  %v41 = vld [vmem:[%s0 + $0x10] sm:$0xf]
  %v42 = vld [vmem:[%s0 + $0x14] sm:$0xf]
  %v43 = vld [vmem:[%s0 + $0x18] sm:$0xf]
  %v44 = vld [vmem:[%s0 + $0x1c] sm:$0xf]
  %v45 = vld [vmem:[%s0 + $0x20] sm:$0xf]
  %v46 = vld [vmem:[%s1] sm:$0xf]
  %v47 = vld [vmem:[%s1 + $0x4] sm:$0xf]
  %v48 = vld [vmem:[%s1 + $0x8] sm:$0xf]
  %v49 = vld [vmem:[%s1 + $0xc] sm:$0xf]
  %v50 = vld [vmem:[%s1 + $0x10] sm:$0xf]
  %v51 = vld [vmem:[%s1 + $0x14] sm:$0xf]
  %v52 = vld [vmem:[%s1 + $0x18] sm:$0xf]
  %v53 = vld [vmem:[%s1 + $0x1c] sm:$0xf]
  %v54 = vld [vmem:[%s1 + $0x20] sm:$0xf]
  %v55 = vld [vmem:[%s1 + $0x24] sm:$0xf]
  %v56 = vld [vmem:[%s1 + $0x28] sm:$0xf]
  %v57 = vld [vmem:[%s1 + $0x2c] sm:$0xf]
  %v58 = vld [vmem:[%s1 + $0x30] sm:$0xf]
  %v59 = vld [vmem:[%s1 + $0x34] sm:$0xf]
  %v60 = vld [vmem:[%s1 + $0x38] sm:$0xf]
  %v61 = vld [vmem:[%s1 + $0x3c] sm:$0xf]
  %v71 = vunpack.c.l.b16 %v37
  %v72 = vunpack.c.l.b16 %v38
  %v73 = vunpack.c.l.b16 %v39
  %v74 = vunpack.c.l.b16 %v40
  %v75 = vunpack.c.l.b16 %v41
  %v76 = vunpack.c.l.b16 %v42
  %v77 = vunpack.c.l.b16 %v43
  %v78 = vunpack.c.l.b16 %v44
  %v79 = vunpack.c.l.b16 %v45
  %v80 = vpack.c.b16 %v72, %v71
  %v81 = vpack.c.b16 %v74, %v73
  %v82 = vpack.c.b16 %v76, %v75
  %v83 = vpack.c.b16 %v78, %v77
  %v84 = vpack.c.b16 %v79, %v79
  %v106 = vunpack.c.l.b16 %v46
  %v107 = vunpack.c.l.b16 %v47
  %v108 = vunpack.c.l.b16 %v48
  %v109 = vunpack.c.l.b16 %v49
  %v110 = vunpack.c.l.b16 %v50
  %v111 = vunpack.c.l.b16 %v51
  %v112 = vunpack.c.l.b16 %v52
  %v113 = vunpack.c.l.b16 %v53
  %v114 = vunpack.c.l.b16 %v54
  %v115 = vunpack.c.l.b16 %v55
  %v116 = vunpack.c.l.b16 %v56
  %v117 = vunpack.c.l.b16 %v57
  %v118 = vunpack.c.l.b16 %v58
  %v119 = vunpack.c.l.b16 %v59
  %v120 = vunpack.c.l.b16 %v60
  %v121 = vunpack.c.l.b16 %v61
  %v122 = vpack.c.b16 %v107, %v106
  %v123 = vpack.c.b16 %v109, %v108
  %v124 = vpack.c.b16 %v111, %v110
  %v125 = vpack.c.b16 %v113, %v112
  %v126 = vpack.c.b16 %v115, %v114
  %v127 = vpack.c.b16 %v117, %v116
  %v128 = vpack.c.b16 %v119, %v118
  %v129 = vpack.c.b16 %v121, %v120
  %138 = vmatprep.subr.bf16.mxu0 0
  %139 = vmatpush1.bf16.msra.mxu0 %v129
  %140 = vmatprep.subr.bf16.mxu0 0
  %141 = vmatpush1.bf16.msra.mxu0 %v128
  %142 = vmatprep.subr.bf16.mxu0 0
  %143 = vmatpush1.bf16.msra.mxu0 %v127
  %144 = vmatprep.subr.bf16.mxu0 0
  %145 = vmatpush1.bf16.msra.mxu0 %v126
  %146 = vmatprep.subr.bf16.mxu0 0
  %147 = vmatpush1.bf16.msra.mxu0 %v125
  %148 = vmatprep.subr.bf16.mxu0 0
  %149 = vmatpush1.bf16.msra.mxu0 %v124
  %150 = vmatprep.subr.bf16.mxu0 0
  %151 = vmatpush1.bf16.msra.mxu0 %v123
  %152 = vmatprep.subr.bf16.mxu0 0
  %153 = vmatpush1.bf16.msra.mxu0 %v122
  %154 = vmatprep.subr.bf16.mxu0 0
  %155 = vmatpush2.bf16.msra.mxu0 0
  %156 = vmatprep.subr.bf16.mxu0 0
  %157 = vmatpush2.bf16.msra.mxu0 0
  %158 = vmatprep.subr.bf16.mxu0 0
  %159 = vmatpush2.bf16.msra.mxu0 0
  %160 = vmatprep.subr.bf16.mxu0 0
  %161 = vmatpush2.bf16.msra.mxu0 0
  %162 = vmatprep.subr.bf16.mxu0 0
  %163 = vmatpush2.bf16.msra.mxu0 0
  %164 = vmatprep.subr.bf16.mxu0 0
  %165 = vmatpush2.bf16.msra.mxu0 0
  %166 = vmatprep.subr.bf16.mxu0 0
  %167 = vmatpush2.bf16.msra.mxu0 0
  %168 = vmatprep.subr.bf16.mxu0 0
  %169 = vmatpush2.bf16.msra.mxu0 0
  %170 = vmatprep.mubr.bf16.mxu0 0
  %171 = vmatmul.mubr.bf16.gmra.mxu0 %v80
  %v172 = vpop.f32.mrf.mxu0
  %v173 = vadd.f32 0.0, %v172
  %v174 = vpop.f32.mrf.mxu0
  %v175 = vpop.f32.mrf.mxu0
  %v176 = vadd.f32 0.0, %v175
  %v177 = vpop.f32.mrf.mxu0
  %178 = vmatprep.mubr.bf16.mxu0 0
  %179 = vmatmul.mubr.bf16.gmra.mxu0 %v81
  %v180 = vpop.f32.mrf.mxu0
  %v181 = vadd.f32 0.0, %v180
  %v182 = vpop.f32.mrf.mxu0
  %v183 = vpop.f32.mrf.mxu0
  %v184 = vadd.f32 0.0, %v183
  %v185 = vpop.f32.mrf.mxu0
  %186 = vmatprep.mubr.bf16.mxu0 0
  %187 = vmatmul.mubr.bf16.gmra.mxu0 %v82
  %v188 = vpop.f32.mrf.mxu0
  %v189 = vadd.f32 0.0, %v188
  %v190 = vpop.f32.mrf.mxu0
  %v191 = vpop.f32.mrf.mxu0
  %v192 = vadd.f32 0.0, %v191
  %v193 = vpop.f32.mrf.mxu0
  %194 = vmatprep.mubr.bf16.mxu0 0
  %195 = vmatmul.mubr.bf16.gmra.mxu0 %v83
  %v196 = vpop.f32.mrf.mxu0
  %v197 = vadd.f32 0.0, %v196
  %v198 = vpop.f32.mrf.mxu0
  %v199 = vpop.f32.mrf.mxu0
  %v200 = vadd.f32 0.0, %v199
  %v201 = vpop.f32.mrf.mxu0
  %202 = vmatprep.mubr.bf16.mxu0 0
  %203 = vmatmul.mubr.bf16.gmra.mxu0 %v84
  %v204 = vpop.f32.mrf.mxu0
  %v205 = vadd.f32 0.0, %v204
  %v206 = vpop.f32.mrf.mxu0
  %v207 = vpop.f32.mrf.mxu0
  %v208 = vpop.f32.mrf.mxu0
  %209 = vdwg.mxu0
  %v210 = vadd.f32 %v28, %v173
  %v211 = vadd.f32 %v29, %v176
  %v212 = vadd.f32 %v30, %v181
  %v213 = vadd.f32 %v31, %v184
  %v214 = vadd.f32 %v32, %v189
  %v215 = vadd.f32 %v33, %v192
  %v216 = vadd.f32 %v34, %v197
  %v217 = vadd.f32 %v35, %v200
  %v218 = vadd.f32 %v36, %v205
  %219 = vst [vmem:[#allocation2] sm:$0xff] %v210
  %220 = vst [vmem:[#allocation2 + $0x8] sm:$0xff] %v211
  %221 = vst [vmem:[#allocation2 + $0x10] sm:$0xff] %v212
  %222 = vst [vmem:[#allocation2 + $0x18] sm:$0xff] %v213
  %223 = vst [vmem:[#allocation2 + $0x20] sm:$0xff] %v214
  %224 = vst [vmem:[#allocation2 + $0x28] sm:$0xff] %v215
  %225 = vst [vmem:[#allocation2 + $0x30] sm:$0xff] %v216
  %226 = vst [vmem:[#allocation2 + $0x38] sm:$0xff] %v217
  %227 = vst [vmem:[#allocation2 + $0x40] sm:$0xff] %v218
  // Predicated region
  $region18: #{cnn_to_rnn_forward.13} parent=0 // pred_check
    %p228 = pneg %p15
  $region19: #{cnn_to_rnn_forward.13} parent=0 // pred_check_branch
    %230 = sbr.rel (%p228) target = $region21
  $region20: #{cnn_to_rnn_forward.13} parent=0 // pred_region
    %v231 = vld [vmem:[#allocation2] sm:$0xff]
    %v232 = vld [vmem:[#allocation2 + $0x8] sm:$0xff]
    %v233 = vld [vmem:[#allocation2 + $0x10] sm:$0xff]
    %v234 = vld [vmem:[#allocation2 + $0x18] sm:$0xff]
    %v235 = vld [vmem:[#allocation2 + $0x20] sm:$0xff]
    %v236 = vld [vmem:[#allocation2 + $0x28] sm:$0xff]
    %v237 = vld [vmem:[#allocation2 + $0x30] sm:$0xff]
    %v238 = vld [vmem:[#allocation2 + $0x38] sm:$0xff]
    %v239 = vld [vmem:[#allocation2 + $0x40] sm:$0xff]
    %v240 = vld [vmem:[%s2] sm:$0x1]
    %v242 = vlaneseq
    %v243 = vshrl.u32 %v242, 7
    %v244 = vsub.s32 0, %v243
    %v245 = vrot.slane %v240, %v244
    %v247 = vadd.f32 %v231, %v245
    %v248 = vadd.f32 %v232, %v245
    %v249 = vadd.f32 %v233, %v245
    %v250 = vadd.f32 %v234, %v245
    %v251 = vadd.f32 %v235, %v245
    %v252 = vadd.f32 %v236, %v245
    %v253 = vadd.f32 %v237, %v245
    %v254 = vadd.f32 %v238, %v245
    %v255 = vadd.f32 %v239, %v245
    %256 = vst [vmem:[%s3] sm:$0xff] %v247
    %257 = vst [vmem:[%s3 + $0x8] sm:$0xff] %v248
    %258 = vst [vmem:[%s3 + $0x10] sm:$0xff] %v249
    %259 = vst [vmem:[%s3 + $0x18] sm:$0xff] %v250
    %260 = vst [vmem:[%s3 + $0x20] sm:$0xff] %v251
    %261 = vst [vmem:[%s3 + $0x28] sm:$0xff] %v252
    %262 = vst [vmem:[%s3 + $0x30] sm:$0xff] %v253
    %263 = vst [vmem:[%s3 + $0x38] sm:$0xff] %v254
    %264 = vst [vmem:[%s3 + $0x40] sm:$0xff] %v255
  $region21: #{cnn_to_rnn_forward.13} parent=0 // pred_fallthru
    _
  // Predicated region
  $region22: #{cnn_to_rnn_forward.13} parent=0 // pred_check
    _
  $region23: #{cnn_to_rnn_forward.13} parent=0 // pred_check_branch
    %266 = sbr.rel (0) target = $region25
  $region24: #{cnn_to_rnn_forward.13} parent=0 // pred_region
    _
  $region25: #{cnn_to_rnn_forward.13} parent=0 // pred_fallthru
    _
  // Predicated region
  $region26: #{cnn_to_rnn_forward.13} parent=0 // pred_check
    _
  $region27: #{cnn_to_rnn_forward.13} parent=0 // pred_check_branch
    %268 = sbr.rel (0) target = $region29
  $region28: #{cnn_to_rnn_forward.13} parent=0 // pred_region
    _
  $region29: #{cnn_to_rnn_forward.13} parent=0 // pred_fallthru
    _

// kernel: cnn_to_rnn_forward.9
$region0: #{cnn_to_rnn_forward.9}
  #allocation0 [shape = 'u32[]', space=smem, size = 0x4, offset = 0x4, fixed_abs, tag = 'smem constant byte address 0x4 - core index']
  #allocation1 [shape = 'u32[144,128]{1,0:T(1,128)}', space=vmem, size = 0x12000, scoped, tag = 'internal scratch']
  #allocation2 [shape = 'f32[72,512]{1,0:T(8,128)}', space=vmem, size = 0x24000, scoped, tag = 'scratch operand']
  %s0 = inlined_call_operand.vmem [shape: bf16[72,128], index: 0, kind: input, shape index: {}]
  %s1 = inlined_call_operand.vmem [shape: bf16[128,512], index: 1, kind: input, shape index: {}]
  %s2 = inlined_call_operand.vmem [shape: f32[1,512], index: 2, kind: input, shape index: {}]
  %s3 = inlined_call_operand.vmem [shape: bf16[72,512], index: 3, kind: output, shape index: {}]
  %s4 = sld [smem:[#allocation0]]
  $region30: #{cnn_to_rnn_forward.9} parent=0
    _
  %s6 = ssub.s32 1, %s4
  %s7 = scalar_select 0, %s6, %s4
  // Predicated region
  $region2: #{cnn_to_rnn_forward.9} parent=0 // pred_check
    _
  $region3: #{cnn_to_rnn_forward.9} parent=0 // pred_check_branch
    %9 = sbr.rel (0) target = $region5
  $region4: #{cnn_to_rnn_forward.9} parent=0 // pred_region
    _
  $region5: #{cnn_to_rnn_forward.9} parent=0 // pred_fallthru
    _
  // Predicated region
  $region6: #{cnn_to_rnn_forward.9} parent=0 // pred_check
    _
  $region7: #{cnn_to_rnn_forward.9} parent=0 // pred_check_branch
    %11 = sbr.rel (0) target = $region9
  $region8: #{cnn_to_rnn_forward.9} parent=0 // pred_region
    _
  $region9: #{cnn_to_rnn_forward.9} parent=0 // pred_fallthru
    _
  // Predicated region
  $region10: #{cnn_to_rnn_forward.9} parent=0 // pred_check
    _
  $region11: #{cnn_to_rnn_forward.9} parent=0 // pred_check_branch
    %13 = sbr.rel (0) target = $region13
  $region12: #{cnn_to_rnn_forward.9} parent=0 // pred_region
    _
  $region13: #{cnn_to_rnn_forward.9} parent=0 // pred_fallthru
    _
  %p15 = scmp.eq.s32.totalorder 0, 0
  // Predicated region
  $region14: #{cnn_to_rnn_forward.9} parent=0 // pred_check
    %p16 = pneg %p15
  $region15: #{cnn_to_rnn_forward.9} parent=0 // pred_check_branch
    %18 = sbr.rel (%p16) target = $region17
  $region16: #{cnn_to_rnn_forward.9} parent=0 // pred_region
    %19 = vst [vmem:[#allocation2] sm:$0xff] 0.0
    %20 = vst [vmem:[#allocation2 + $0x8] sm:$0xff] 0.0
    %21 = vst [vmem:[#allocation2 + $0x10] sm:$0xff] 0.0
    %22 = vst [vmem:[#allocation2 + $0x18] sm:$0xff] 0.0
    %23 = vst [vmem:[#allocation2 + $0x20] sm:$0xff] 0.0
    %24 = vst [vmem:[#allocation2 + $0x28] sm:$0xff] 0.0
    %25 = vst [vmem:[#allocation2 + $0x30] sm:$0xff] 0.0
    %26 = vst [vmem:[#allocation2 + $0x38] sm:$0xff] 0.0
    %27 = vst [vmem:[#allocation2 + $0x40] sm:$0xff] 0.0
    %28 = vst [vmem:[#allocation2 + $0x48] sm:$0xff] 0.0
    %29 = vst [vmem:[#allocation2 + $0x50] sm:$0xff] 0.0
    %30 = vst [vmem:[#allocation2 + $0x58] sm:$0xff] 0.0
    %31 = vst [vmem:[#allocation2 + $0x60] sm:$0xff] 0.0
    %32 = vst [vmem:[#allocation2 + $0x68] sm:$0xff] 0.0
    %33 = vst [vmem:[#allocation2 + $0x70] sm:$0xff] 0.0
    %34 = vst [vmem:[#allocation2 + $0x78] sm:$0xff] 0.0
    %35 = vst [vmem:[#allocation2 + $0x80] sm:$0xff] 0.0
    %36 = vst [vmem:[#allocation2 + $0x88] sm:$0xff] 0.0
    %37 = vst [vmem:[#allocation2 + $0x90] sm:$0xff] 0.0
    %38 = vst [vmem:[#allocation2 + $0x98] sm:$0xff] 0.0
    %39 = vst [vmem:[#allocation2 + $0xa0] sm:$0xff] 0.0
    %40 = vst [vmem:[#allocation2 + $0xa8] sm:$0xff] 0.0
    %41 = vst [vmem:[#allocation2 + $0xb0] sm:$0xff] 0.0
    %42 = vst [vmem:[#allocation2 + $0xb8] sm:$0xff] 0.0
    %43 = vst [vmem:[#allocation2 + $0xc0] sm:$0xff] 0.0
    %44 = vst [vmem:[#allocation2 + $0xc8] sm:$0xff] 0.0
    %45 = vst [vmem:[#allocation2 + $0xd0] sm:$0xff] 0.0
    %46 = vst [vmem:[#allocation2 + $0xd8] sm:$0xff] 0.0
    %47 = vst [vmem:[#allocation2 + $0xe0] sm:$0xff] 0.0
    %48 = vst [vmem:[#allocation2 + $0xe8] sm:$0xff] 0.0
    %49 = vst [vmem:[#allocation2 + $0xf0] sm:$0xff] 0.0
    %50 = vst [vmem:[#allocation2 + $0xf8] sm:$0xff] 0.0
    %51 = vst [vmem:[#allocation2 + $0x100] sm:$0xff] 0.0
    %52 = vst [vmem:[#allocation2 + $0x108] sm:$0xff] 0.0
    %53 = vst [vmem:[#allocation2 + $0x110] sm:$0xff] 0.0
    %54 = vst [vmem:[#allocation2 + $0x118] sm:$0xff] 0.0
  $region17: #{cnn_to_rnn_forward.9} parent=0 // pred_fallthru
    _
  %v55 = vld [vmem:[#allocation2] sm:$0xff]
  %v56 = vld [vmem:[#allocation2 + $0x8] sm:$0xff]
  %v57 = vld [vmem:[#allocation2 + $0x10] sm:$0xff]
  %v58 = vld [vmem:[#allocation2 + $0x18] sm:$0xff]
  %v59 = vld [vmem:[#allocation2 + $0x20] sm:$0xff]
  %v60 = vld [vmem:[#allocation2 + $0x28] sm:$0xff]
  %v61 = vld [vmem:[#allocation2 + $0x30] sm:$0xff]
  %v62 = vld [vmem:[#allocation2 + $0x38] sm:$0xff]
  %v63 = vld [vmem:[#allocation2 + $0x40] sm:$0xff]
  %v64 = vld [vmem:[#allocation2 + $0x48] sm:$0xff]
  %v65 = vld [vmem:[#allocation2 + $0x50] sm:$0xff]
  %v66 = vld [vmem:[#allocation2 + $0x58] sm:$0xff]
  %v67 = vld [vmem:[#allocation2 + $0x60] sm:$0xff]
  %v68 = vld [vmem:[#allocation2 + $0x68] sm:$0xff]
  %v69 = vld [vmem:[#allocation2 + $0x70] sm:$0xff]
  %v70 = vld [vmem:[#allocation2 + $0x78] sm:$0xff]
  %v71 = vld [vmem:[#allocation2 + $0x80] sm:$0xff]
  %v72 = vld [vmem:[#allocation2 + $0x88] sm:$0xff]
  %v73 = vld [vmem:[#allocation2 + $0x90] sm:$0xff]
  %v74 = vld [vmem:[#allocation2 + $0x98] sm:$0xff]
  %v75 = vld [vmem:[#allocation2 + $0xa0] sm:$0xff]
  %v76 = vld [vmem:[#allocation2 + $0xa8] sm:$0xff]
  %v77 = vld [vmem:[#allocation2 + $0xb0] sm:$0xff]
  %v78 = vld [vmem:[#allocation2 + $0xb8] sm:$0xff]
  %v79 = vld [vmem:[#allocation2 + $0xc0] sm:$0xff]
  %v80 = vld [vmem:[#allocation2 + $0xc8] sm:$0xff]
  %v81 = vld [vmem:[#allocation2 + $0xd0] sm:$0xff]
  %v82 = vld [vmem:[#allocation2 + $0xd8] sm:$0xff]
  %v83 = vld [vmem:[#allocation2 + $0xe0] sm:$0xff]
  %v84 = vld [vmem:[#allocation2 + $0xe8] sm:$0xff]
  %v85 = vld [vmem:[#allocation2 + $0xf0] sm:$0xff]
  %v86 = vld [vmem:[#allocation2 + $0xf8] sm:$0xff]
  %v87 = vld [vmem:[#allocation2 + $0x100] sm:$0xff]
  %v88 = vld [vmem:[#allocation2 + $0x108] sm:$0xff]
  %v89 = vld [vmem:[#allocation2 + $0x110] sm:$0xff]
  %v90 = vld [vmem:[#allocation2 + $0x118] sm:$0xff]
  %v91 = vld [vmem:[%s0] sm:$0xf]
  %v92 = vld [vmem:[%s0 + $0x4] sm:$0xf]
  %v93 = vld [vmem:[%s0 + $0x8] sm:$0xf]
  %v94 = vld [vmem:[%s0 + $0xc] sm:$0xf]
  %v95 = vld [vmem:[%s0 + $0x10] sm:$0xf]
  %v96 = vld [vmem:[%s0 + $0x14] sm:$0xf]
  %v97 = vld [vmem:[%s0 + $0x18] sm:$0xf]
  %v98 = vld [vmem:[%s0 + $0x1c] sm:$0xf]
  %v99 = vld [vmem:[%s0 + $0x20] sm:$0xf]
  %v100 = vld [vmem:[%s1] sm:$0xff]
  %v101 = vld [vmem:[%s1 + $0x8] sm:$0xff]
  %v102 = vld [vmem:[%s1 + $0x10] sm:$0xff]
  %v103 = vld [vmem:[%s1 + $0x18] sm:$0xff]
  %v104 = vld [vmem:[%s1 + $0x20] sm:$0xff]
  %v105 = vld [vmem:[%s1 + $0x28] sm:$0xff]
  %v106 = vld [vmem:[%s1 + $0x30] sm:$0xff]
  %v107 = vld [vmem:[%s1 + $0x38] sm:$0xff]
  %v108 = vld [vmem:[%s1 + $0x40] sm:$0xff]
  %v109 = vld [vmem:[%s1 + $0x48] sm:$0xff]
  %v110 = vld [vmem:[%s1 + $0x50] sm:$0xff]
  %v111 = vld [vmem:[%s1 + $0x58] sm:$0xff]
  %v112 = vld [vmem:[%s1 + $0x60] sm:$0xff]
  %v113 = vld [vmem:[%s1 + $0x68] sm:$0xff]
  %v114 = vld [vmem:[%s1 + $0x70] sm:$0xff]
  %v115 = vld [vmem:[%s1 + $0x78] sm:$0xff]
  %v116 = vld [vmem:[%s1 + $0x80] sm:$0xff]
  %v117 = vld [vmem:[%s1 + $0x88] sm:$0xff]
  %v118 = vld [vmem:[%s1 + $0x90] sm:$0xff]
  %v119 = vld [vmem:[%s1 + $0x98] sm:$0xff]
  %v120 = vld [vmem:[%s1 + $0xa0] sm:$0xff]
  %v121 = vld [vmem:[%s1 + $0xa8] sm:$0xff]
  %v122 = vld [vmem:[%s1 + $0xb0] sm:$0xff]
  %v123 = vld [vmem:[%s1 + $0xb8] sm:$0xff]
  %v124 = vld [vmem:[%s1 + $0xc0] sm:$0xff]
  %v125 = vld [vmem:[%s1 + $0xc8] sm:$0xff]
  %v126 = vld [vmem:[%s1 + $0xd0] sm:$0xff]
  %v127 = vld [vmem:[%s1 + $0xd8] sm:$0xff]
  %v128 = vld [vmem:[%s1 + $0xe0] sm:$0xff]
  %v129 = vld [vmem:[%s1 + $0xe8] sm:$0xff]
  %v130 = vld [vmem:[%s1 + $0xf0] sm:$0xff]
  %v131 = vld [vmem:[%s1 + $0xf8] sm:$0xff]
  %v141 = vunpack.c.l.b16 %v91
  %v142 = vunpack.c.l.b16 %v92
  %v143 = vunpack.c.l.b16 %v93
  %v144 = vunpack.c.l.b16 %v94
  %v145 = vunpack.c.l.b16 %v95
  %v146 = vunpack.c.l.b16 %v96
  %v147 = vunpack.c.l.b16 %v97
  %v148 = vunpack.c.l.b16 %v98
  %v149 = vunpack.c.l.b16 %v99
  %v150 = vpack.c.b16 %v142, %v141
  %v151 = vpack.c.b16 %v144, %v143
  %v152 = vpack.c.b16 %v146, %v145
  %v153 = vpack.c.b16 %v148, %v147
  %v154 = vpack.c.b16 %v149, %v149
  %v192 = vunpack.c.l.b16 %v100
  %v193 = vunpack.c.h.b16 %v100
  %v194 = vunpack.c.l.b16 %v101
  %v195 = vunpack.c.h.b16 %v101
  %v196 = vunpack.c.l.b16 %v102
  %v197 = vunpack.c.h.b16 %v102
  %v198 = vunpack.c.l.b16 %v103
  %v199 = vunpack.c.h.b16 %v103
  %v200 = vunpack.c.l.b16 %v104
  %v201 = vunpack.c.h.b16 %v104
  %v202 = vunpack.c.l.b16 %v105
  %v203 = vunpack.c.h.b16 %v105
  %v204 = vunpack.c.l.b16 %v106
  %v205 = vunpack.c.h.b16 %v106
  %v206 = vunpack.c.l.b16 %v107
  %v207 = vunpack.c.h.b16 %v107
  %v208 = vunpack.c.l.b16 %v108
  %v209 = vunpack.c.h.b16 %v108
  %v210 = vunpack.c.l.b16 %v109
  %v211 = vunpack.c.h.b16 %v109
  %v212 = vunpack.c.l.b16 %v110
  %v213 = vunpack.c.h.b16 %v110
  %v214 = vunpack.c.l.b16 %v111
  %v215 = vunpack.c.h.b16 %v111
  %v216 = vunpack.c.l.b16 %v112
  %v217 = vunpack.c.h.b16 %v112
  %v218 = vunpack.c.l.b16 %v113
  %v219 = vunpack.c.h.b16 %v113
  %v220 = vunpack.c.l.b16 %v114
  %v221 = vunpack.c.h.b16 %v114
  %v222 = vunpack.c.l.b16 %v115
  %v223 = vunpack.c.h.b16 %v115
  %v224 = vunpack.c.l.b16 %v116
  %v225 = vunpack.c.h.b16 %v116
  %v226 = vunpack.c.l.b16 %v117
  %v227 = vunpack.c.h.b16 %v117
  %v228 = vunpack.c.l.b16 %v118
  %v229 = vunpack.c.h.b16 %v118
  %v230 = vunpack.c.l.b16 %v119
  %v231 = vunpack.c.h.b16 %v119
  %v232 = vunpack.c.l.b16 %v120
  %v233 = vunpack.c.h.b16 %v120
  %v234 = vunpack.c.l.b16 %v121
  %v235 = vunpack.c.h.b16 %v121
  %v236 = vunpack.c.l.b16 %v122
  %v237 = vunpack.c.h.b16 %v122
  %v238 = vunpack.c.l.b16 %v123
  %v239 = vunpack.c.h.b16 %v123
  %v240 = vunpack.c.l.b16 %v124
  %v241 = vunpack.c.h.b16 %v124
  %v242 = vunpack.c.l.b16 %v125
  %v243 = vunpack.c.h.b16 %v125
  %v244 = vunpack.c.l.b16 %v126
  %v245 = vunpack.c.h.b16 %v126
  %v246 = vunpack.c.l.b16 %v127
  %v247 = vunpack.c.h.b16 %v127
  %v248 = vunpack.c.l.b16 %v128
  %v249 = vunpack.c.h.b16 %v128
  %v250 = vunpack.c.l.b16 %v129
  %v251 = vunpack.c.h.b16 %v129
  %v252 = vunpack.c.l.b16 %v130
  %v253 = vunpack.c.h.b16 %v130
  %v254 = vunpack.c.l.b16 %v131
  %v255 = vunpack.c.h.b16 %v131
  %v256 = vpack.c.b16 %v196, %v192
  %v257 = vpack.c.b16 %v197, %v193
  %v258 = vpack.c.b16 %v198, %v194
  %v259 = vpack.c.b16 %v199, %v195
  %v260 = vpack.c.b16 %v204, %v200
  %v261 = vpack.c.b16 %v205, %v201
  %v262 = vpack.c.b16 %v206, %v202
  %v263 = vpack.c.b16 %v207, %v203
  %v264 = vpack.c.b16 %v212, %v208
  %v265 = vpack.c.b16 %v213, %v209
  %v266 = vpack.c.b16 %v214, %v210
  %v267 = vpack.c.b16 %v215, %v211
  %v268 = vpack.c.b16 %v220, %v216
  %v269 = vpack.c.b16 %v221, %v217
  %v270 = vpack.c.b16 %v222, %v218
  %v271 = vpack.c.b16 %v223, %v219
  %v272 = vpack.c.b16 %v228, %v224
  %v273 = vpack.c.b16 %v229, %v225
  %v274 = vpack.c.b16 %v230, %v226
  %v275 = vpack.c.b16 %v231, %v227
  %v276 = vpack.c.b16 %v236, %v232
  %v277 = vpack.c.b16 %v237, %v233
  %v278 = vpack.c.b16 %v238, %v234
  %v279 = vpack.c.b16 %v239, %v235
  %v280 = vpack.c.b16 %v244, %v240
  %v281 = vpack.c.b16 %v245, %v241
  %v282 = vpack.c.b16 %v246, %v242
  %v283 = vpack.c.b16 %v247, %v243
  %v284 = vpack.c.b16 %v252, %v248
  %v285 = vpack.c.b16 %v253, %v249
  %v286 = vpack.c.b16 %v254, %v250
  %v287 = vpack.c.b16 %v255, %v251
  %320 = vmatprep.subr.bf16.mxu0 %v285
  %321 = vmatpush1.bf16.msra.mxu0 %v284
  %322 = vmatprep.subr.bf16.mxu0 %v281
  %323 = vmatpush1.bf16.msra.mxu0 %v280
  %324 = vmatprep.subr.bf16.mxu0 %v277
  %325 = vmatpush1.bf16.msra.mxu0 %v276
  %326 = vmatprep.subr.bf16.mxu0 %v273
  %327 = vmatpush1.bf16.msra.mxu0 %v272
  %328 = vmatprep.subr.bf16.mxu0 %v269
  %329 = vmatpush1.bf16.msra.mxu0 %v268
  %330 = vmatprep.subr.bf16.mxu0 %v265
  %331 = vmatpush1.bf16.msra.mxu0 %v264
  %332 = vmatprep.subr.bf16.mxu0 %v261
  %333 = vmatpush1.bf16.msra.mxu0 %v260
  %334 = vmatprep.subr.bf16.mxu0 %v257
  %335 = vmatpush1.bf16.msra.mxu0 %v256
  %336 = vmatprep.subr.bf16.mxu0 0
  %337 = vmatpush2.bf16.msra.mxu0 0
  %338 = vmatprep.subr.bf16.mxu0 0
  %339 = vmatpush2.bf16.msra.mxu0 0
  %340 = vmatprep.subr.bf16.mxu0 0
  %341 = vmatpush2.bf16.msra.mxu0 0
  %342 = vmatprep.subr.bf16.mxu0 0
  %343 = vmatpush2.bf16.msra.mxu0 0
  %344 = vmatprep.subr.bf16.mxu0 0
  %345 = vmatpush2.bf16.msra.mxu0 0
  %346 = vmatprep.subr.bf16.mxu0 0
  %347 = vmatpush2.bf16.msra.mxu0 0
  %348 = vmatprep.subr.bf16.mxu0 0
  %349 = vmatpush2.bf16.msra.mxu0 0
  %350 = vmatprep.subr.bf16.mxu0 0
  %351 = vmatpush2.bf16.msra.mxu0 0
  %352 = vmatprep.mubr.bf16.mxu0 0
  %353 = vmatmul.mubr.bf16.gmra.mxu0 %v150
  %v354 = vpop.f32.mrf.mxu0
  %v355 = vadd.f32 0.0, %v354
  %v356 = vpop.f32.mrf.mxu0
  %v357 = vadd.f32 0.0, %v356
  %v358 = vpop.f32.mrf.mxu0
  %v359 = vadd.f32 0.0, %v358
  %v360 = vpop.f32.mrf.mxu0
  %v361 = vadd.f32 0.0, %v360
  %362 = vmatprep.mubr.bf16.mxu0 0
  %363 = vmatmul.mubr.bf16.gmra.mxu0 %v151
  %v364 = vpop.f32.mrf.mxu0
  %v365 = vadd.f32 0.0, %v364
  %v366 = vpop.f32.mrf.mxu0
  %v367 = vadd.f32 0.0, %v366
  %v368 = vpop.f32.mrf.mxu0
  %v369 = vadd.f32 0.0, %v368
  %v370 = vpop.f32.mrf.mxu0
  %v371 = vadd.f32 0.0, %v370
  %372 = vmatprep.mubr.bf16.mxu0 0
  %373 = vmatmul.mubr.bf16.gmra.mxu0 %v152
  %v374 = vpop.f32.mrf.mxu0
  %v375 = vadd.f32 0.0, %v374
  %v376 = vpop.f32.mrf.mxu0
  %v377 = vadd.f32 0.0, %v376
  %v378 = vpop.f32.mrf.mxu0
  %v379 = vadd.f32 0.0, %v378
  %v380 = vpop.f32.mrf.mxu0
  %v381 = vadd.f32 0.0, %v380
  %382 = vmatprep.mubr.bf16.mxu0 0
  %383 = vmatmul.mubr.bf16.gmra.mxu0 %v153
  %v384 = vpop.f32.mrf.mxu0
  %v385 = vadd.f32 0.0, %v384
  %v386 = vpop.f32.mrf.mxu0
  %v387 = vadd.f32 0.0, %v386
  %v388 = vpop.f32.mrf.mxu0
  %v389 = vadd.f32 0.0, %v388
  %v390 = vpop.f32.mrf.mxu0
  %v391 = vadd.f32 0.0, %v390
  %392 = vmatprep.mubr.bf16.mxu0 0
  %393 = vmatmul.mubr.bf16.gmra.mxu0 %v154
  %v394 = vpop.f32.mrf.mxu0
  %v395 = vadd.f32 0.0, %v394
  %v396 = vpop.f32.mrf.mxu0
  %v397 = vadd.f32 0.0, %v396
  %v398 = vpop.f32.mrf.mxu0
  %v399 = vpop.f32.mrf.mxu0
  %400 = vdwg.mxu0
  %401 = vmatprep.subr.bf16.mxu0 %v287
  %402 = vmatpush1.bf16.msra.mxu0 %v286
  %403 = vmatprep.subr.bf16.mxu0 %v283
  %404 = vmatpush1.bf16.msra.mxu0 %v282
  %405 = vmatprep.subr.bf16.mxu0 %v279
  %406 = vmatpush1.bf16.msra.mxu0 %v278
  %407 = vmatprep.subr.bf16.mxu0 %v275
  %408 = vmatpush1.bf16.msra.mxu0 %v274
  %409 = vmatprep.subr.bf16.mxu0 %v271
  %410 = vmatpush1.bf16.msra.mxu0 %v270
  %411 = vmatprep.subr.bf16.mxu0 %v267
  %412 = vmatpush1.bf16.msra.mxu0 %v266
  %413 = vmatprep.subr.bf16.mxu0 %v263
  %414 = vmatpush1.bf16.msra.mxu0 %v262
  %415 = vmatprep.subr.bf16.mxu0 %v259
  %416 = vmatpush1.bf16.msra.mxu0 %v258
  %417 = vmatprep.subr.bf16.mxu0 0
  %418 = vmatpush2.bf16.msra.mxu0 0
  %419 = vmatprep.subr.bf16.mxu0 0
  %420 = vmatpush2.bf16.msra.mxu0 0
  %421 = vmatprep.subr.bf16.mxu0 0
  %422 = vmatpush2.bf16.msra.mxu0 0
  %423 = vmatprep.subr.bf16.mxu0 0
  %424 = vmatpush2.bf16.msra.mxu0 0
  %425 = vmatprep.subr.bf16.mxu0 0
  %426 = vmatpush2.bf16.msra.mxu0 0
  %427 = vmatprep.subr.bf16.mxu0 0
  %428 = vmatpush2.bf16.msra.mxu0 0
  %429 = vmatprep.subr.bf16.mxu0 0
  %430 = vmatpush2.bf16.msra.mxu0 0
  %431 = vmatprep.subr.bf16.mxu0 0
  %432 = vmatpush2.bf16.msra.mxu0 0
  %433 = vmatprep.mubr.bf16.mxu0 0
  %434 = vmatmul.mubr.bf16.gmra.mxu0 %v150
  %v435 = vpop.f32.mrf.mxu0
  %v436 = vadd.f32 0.0, %v435
  %v437 = vpop.f32.mrf.mxu0
  %v438 = vadd.f32 0.0, %v437
  %v439 = vpop.f32.mrf.mxu0
  %v440 = vadd.f32 0.0, %v439
  %v441 = vpop.f32.mrf.mxu0
  %v442 = vadd.f32 0.0, %v441
  %443 = vmatprep.mubr.bf16.mxu0 0
  %444 = vmatmul.mubr.bf16.gmra.mxu0 %v151
  %v445 = vpop.f32.mrf.mxu0
  %v446 = vadd.f32 0.0, %v445
  %v447 = vpop.f32.mrf.mxu0
  %v448 = vadd.f32 0.0, %v447
  %v449 = vpop.f32.mrf.mxu0
  %v450 = vadd.f32 0.0, %v449
  %v451 = vpop.f32.mrf.mxu0
  %v452 = vadd.f32 0.0, %v451
  %453 = vmatprep.mubr.bf16.mxu0 0
  %454 = vmatmul.mubr.bf16.gmra.mxu0 %v152
  %v455 = vpop.f32.mrf.mxu0
  %v456 = vadd.f32 0.0, %v455
  %v457 = vpop.f32.mrf.mxu0
  %v458 = vadd.f32 0.0, %v457
  %v459 = vpop.f32.mrf.mxu0
  %v460 = vadd.f32 0.0, %v459
  %v461 = vpop.f32.mrf.mxu0
  %v462 = vadd.f32 0.0, %v461
  %463 = vmatprep.mubr.bf16.mxu0 0
  %464 = vmatmul.mubr.bf16.gmra.mxu0 %v153
  %v465 = vpop.f32.mrf.mxu0
  %v466 = vadd.f32 0.0, %v465
  %v467 = vpop.f32.mrf.mxu0
  %v468 = vadd.f32 0.0, %v467
  %v469 = vpop.f32.mrf.mxu0
  %v470 = vadd.f32 0.0, %v469
  %v471 = vpop.f32.mrf.mxu0
  %v472 = vadd.f32 0.0, %v471
  %473 = vmatprep.mubr.bf16.mxu0 0
  %474 = vmatmul.mubr.bf16.gmra.mxu0 %v154
  %v475 = vpop.f32.mrf.mxu0
  %v476 = vadd.f32 0.0, %v475
  %v477 = vpop.f32.mrf.mxu0
  %v478 = vadd.f32 0.0, %v477
  %v479 = vpop.f32.mrf.mxu0
  %v480 = vpop.f32.mrf.mxu0
  %481 = vdwg.mxu0
  %v482 = vadd.f32 %v55, %v355
  %v483 = vadd.f32 %v56, %v357
  %v484 = vadd.f32 %v57, %v436
  %v485 = vadd.f32 %v58, %v438
  %v486 = vadd.f32 %v59, %v359
  %v487 = vadd.f32 %v60, %v361
  %v488 = vadd.f32 %v61, %v440
  %v489 = vadd.f32 %v62, %v442
  %v490 = vadd.f32 %v63, %v365
  %v491 = vadd.f32 %v64, %v367
  %v492 = vadd.f32 %v65, %v446
  %v493 = vadd.f32 %v66, %v448
  %v494 = vadd.f32 %v67, %v369
  %v495 = vadd.f32 %v68, %v371
  %v496 = vadd.f32 %v69, %v450
  %v497 = vadd.f32 %v70, %v452
  %v498 = vadd.f32 %v71, %v375
  %v499 = vadd.f32 %v72, %v377
  %v500 = vadd.f32 %v73, %v456
  %v501 = vadd.f32 %v74, %v458
  %v502 = vadd.f32 %v75, %v379
  %v503 = vadd.f32 %v76, %v381
  %v504 = vadd.f32 %v77, %v460
  %v505 = vadd.f32 %v78, %v462
  %v506 = vadd.f32 %v79, %v385
  %v507 = vadd.f32 %v80, %v387
  %v508 = vadd.f32 %v81, %v466
  %v509 = vadd.f32 %v82, %v468
  %v510 = vadd.f32 %v83, %v389
  %v511 = vadd.f32 %v84, %v391
  %v512 = vadd.f32 %v85, %v470
  %v513 = vadd.f32 %v86, %v472
  %v514 = vadd.f32 %v87, %v395
  %v515 = vadd.f32 %v88, %v397
  %v516 = vadd.f32 %v89, %v476
  %v517 = vadd.f32 %v90, %v478
  %518 = vst [vmem:[#allocation2] sm:$0xff] %v482
  %519 = vst [vmem:[#allocation2 + $0x8] sm:$0xff] %v483
  %520 = vst [vmem:[#allocation2 + $0x10] sm:$0xff] %v484
  %521 = vst [vmem:[#allocation2 + $0x18] sm:$0xff] %v485
  %522 = vst [vmem:[#allocation2 + $0x20] sm:$0xff] %v486
  %523 = vst [vmem:[#allocation2 + $0x28] sm:$0xff] %v487
  %524 = vst [vmem:[#allocation2 + $0x30] sm:$0xff] %v488
  %525 = vst [vmem:[#allocation2 + $0x38] sm:$0xff] %v489
  %526 = vst [vmem:[#allocation2 + $0x40] sm:$0xff] %v490
  %527 = vst [vmem:[#allocation2 + $0x48] sm:$0xff] %v491
  %528 = vst [vmem:[#allocation2 + $0x50] sm:$0xff] %v492
  %529 = vst [vmem:[#allocation2 + $0x58] sm:$0xff] %v493
  %530 = vst [vmem:[#allocation2 + $0x60] sm:$0xff] %v494
  %531 = vst [vmem:[#allocation2 + $0x68] sm:$0xff] %v495
  %532 = vst [vmem:[#allocation2 + $0x70] sm:$0xff] %v496
  %533 = vst [vmem:[#allocation2 + $0x78] sm:$0xff] %v497
  %534 = vst [vmem:[#allocation2 + $0x80] sm:$0xff] %v498
  %535 = vst [vmem:[#allocation2 + $0x88] sm:$0xff] %v499
  %536 = vst [vmem:[#allocation2 + $0x90] sm:$0xff] %v500
  %537 = vst [vmem:[#allocation2 + $0x98] sm:$0xff] %v501
  %538 = vst [vmem:[#allocation2 + $0xa0] sm:$0xff] %v502
  %539 = vst [vmem:[#allocation2 + $0xa8] sm:$0xff] %v503
  %540 = vst [vmem:[#allocation2 + $0xb0] sm:$0xff] %v504
  %541 = vst [vmem:[#allocation2 + $0xb8] sm:$0xff] %v505
  %542 = vst [vmem:[#allocation2 + $0xc0] sm:$0xff] %v506
  %543 = vst [vmem:[#allocation2 + $0xc8] sm:$0xff] %v507
  %544 = vst [vmem:[#allocation2 + $0xd0] sm:$0xff] %v508
  %545 = vst [vmem:[#allocation2 + $0xd8] sm:$0xff] %v509
  %546 = vst [vmem:[#allocation2 + $0xe0] sm:$0xff] %v510
  %547 = vst [vmem:[#allocation2 + $0xe8] sm:$0xff] %v511
  %548 = vst [vmem:[#allocation2 + $0xf0] sm:$0xff] %v512
  %549 = vst [vmem:[#allocation2 + $0xf8] sm:$0xff] %v513
  %550 = vst [vmem:[#allocation2 + $0x100] sm:$0xff] %v514
  %551 = vst [vmem:[#allocation2 + $0x108] sm:$0xff] %v515
  %552 = vst [vmem:[#allocation2 + $0x110] sm:$0xff] %v516
  %553 = vst [vmem:[#allocation2 + $0x118] sm:$0xff] %v517
  // Predicated region
  $region18: #{cnn_to_rnn_forward.9} parent=0 // pred_check
    %p554 = pneg %p15
  $region19: #{cnn_to_rnn_forward.9} parent=0 // pred_check_branch
    %556 = sbr.rel (%p554) target = $region21
  $region20: #{cnn_to_rnn_forward.9} parent=0 // pred_region
    %v557 = vld [vmem:[#allocation2] sm:$0xff]
    %v558 = vld [vmem:[#allocation2 + $0x8] sm:$0xff]
    %v559 = vld [vmem:[#allocation2 + $0x10] sm:$0xff]
    %v560 = vld [vmem:[#allocation2 + $0x18] sm:$0xff]
    %v561 = vld [vmem:[#allocation2 + $0x20] sm:$0xff]
    %v562 = vld [vmem:[#allocation2 + $0x28] sm:$0xff]
    %v563 = vld [vmem:[#allocation2 + $0x30] sm:$0xff]
    %v564 = vld [vmem:[#allocation2 + $0x38] sm:$0xff]
    %v565 = vld [vmem:[#allocation2 + $0x40] sm:$0xff]
    %v566 = vld [vmem:[#allocation2 + $0x48] sm:$0xff]
    %v567 = vld [vmem:[#allocation2 + $0x50] sm:$0xff]
    %v568 = vld [vmem:[#allocation2 + $0x58] sm:$0xff]
    %v569 = vld [vmem:[#allocation2 + $0x60] sm:$0xff]
    %v570 = vld [vmem:[#allocation2 + $0x68] sm:$0xff]
    %v571 = vld [vmem:[#allocation2 + $0x70] sm:$0xff]
    %v572 = vld [vmem:[#allocation2 + $0x78] sm:$0xff]
    %v573 = vld [vmem:[#allocation2 + $0x80] sm:$0xff]
    %v574 = vld [vmem:[#allocation2 + $0x88] sm:$0xff]
    %v575 = vld [vmem:[#allocation2 + $0x90] sm:$0xff]
    %v576 = vld [vmem:[#allocation2 + $0x98] sm:$0xff]
    %v577 = vld [vmem:[#allocation2 + $0xa0] sm:$0xff]
    %v578 = vld [vmem:[#allocation2 + $0xa8] sm:$0xff]
    %v579 = vld [vmem:[#allocation2 + $0xb0] sm:$0xff]
    %v580 = vld [vmem:[#allocation2 + $0xb8] sm:$0xff]
    %v581 = vld [vmem:[#allocation2 + $0xc0] sm:$0xff]
    %v582 = vld [vmem:[#allocation2 + $0xc8] sm:$0xff]
    %v583 = vld [vmem:[#allocation2 + $0xd0] sm:$0xff]
    %v584 = vld [vmem:[#allocation2 + $0xd8] sm:$0xff]
    %v585 = vld [vmem:[#allocation2 + $0xe0] sm:$0xff]
    %v586 = vld [vmem:[#allocation2 + $0xe8] sm:$0xff]
    %v587 = vld [vmem:[#allocation2 + $0xf0] sm:$0xff]
    %v588 = vld [vmem:[#allocation2 + $0xf8] sm:$0xff]
    %v589 = vld [vmem:[#allocation2 + $0x100] sm:$0xff]
    %v590 = vld [vmem:[#allocation2 + $0x108] sm:$0xff]
    %v591 = vld [vmem:[#allocation2 + $0x110] sm:$0xff]
    %v592 = vld [vmem:[#allocation2 + $0x118] sm:$0xff]
    %v593 = vld [vmem:[%s2] sm:$0xf]
    %v595 = vlaneseq
    %v596 = vshrl.u32 %v595, 7
    %v597 = vsub.s32 0, %v596
    %v598 = vrot.slane %v593, %v597
    %v599 = vlaneseq
    %v600 = vshrl.u32 %v599, 7
    %v601 = vsub.s32 1, %v600
    %v602 = vrot.slane %v593, %v601
    %v603 = vlaneseq
    %v604 = vshrl.u32 %v603, 7
    %v605 = vsub.s32 2, %v604
    %v606 = vrot.slane %v593, %v605
    %v607 = vlaneseq
    %v608 = vshrl.u32 %v607, 7
    %v609 = vsub.s32 3, %v608
    %v610 = vrot.slane %v593, %v609
    %v615 = vadd.f32 %v557, %v598
    %v616 = vadd.f32 %v558, %v602
    %v617 = vadd.f32 %v559, %v606
    %v618 = vadd.f32 %v560, %v610
    %v619 = vadd.f32 %v561, %v598
    %v620 = vadd.f32 %v562, %v602
    %v621 = vadd.f32 %v563, %v606
    %v622 = vadd.f32 %v564, %v610
    %v623 = vadd.f32 %v565, %v598
    %v624 = vadd.f32 %v566, %v602
    %v625 = vadd.f32 %v567, %v606
    %v626 = vadd.f32 %v568, %v610
    %v627 = vadd.f32 %v569, %v598
    %v628 = vadd.f32 %v570, %v602
    %v629 = vadd.f32 %v571, %v606
    %v630 = vadd.f32 %v572, %v610
    %v631 = vadd.f32 %v573, %v598
    %v632 = vadd.f32 %v574, %v602
    %v633 = vadd.f32 %v575, %v606
    %v634 = vadd.f32 %v576, %v610
    %v635 = vadd.f32 %v577, %v598
    %v636 = vadd.f32 %v578, %v602
    %v637 = vadd.f32 %v579, %v606
    %v638 = vadd.f32 %v580, %v610
    %v639 = vadd.f32 %v581, %v598
    %v640 = vadd.f32 %v582, %v602
    %v641 = vadd.f32 %v583, %v606
    %v642 = vadd.f32 %v584, %v610
    %v643 = vadd.f32 %v585, %v598
    %v644 = vadd.f32 %v586, %v602
    %v645 = vadd.f32 %v587, %v606
    %v646 = vadd.f32 %v588, %v610
    %v647 = vadd.f32 %v589, %v598
    %v648 = vadd.f32 %v590, %v602
    %v649 = vadd.f32 %v591, %v606
    %v650 = vadd.f32 %v592, %v610
    %v651 = vpack.c.bf16 %v619, %v615
    %v652 = vpack.c.bf16 %v620, %v616
    %v653 = vpack.c.bf16 %v621, %v617
    %v654 = vpack.c.bf16 %v622, %v618
    %v655 = vpack.c.bf16 %v627, %v623
    %v656 = vpack.c.bf16 %v628, %v624
    %v657 = vpack.c.bf16 %v629, %v625
    %v658 = vpack.c.bf16 %v630, %v626
    %v659 = vpack.c.bf16 %v635, %v631
    %v660 = vpack.c.bf16 %v636, %v632
    %v661 = vpack.c.bf16 %v637, %v633
    %v662 = vpack.c.bf16 %v638, %v634
    %v663 = vpack.c.bf16 %v643, %v639
    %v664 = vpack.c.bf16 %v644, %v640
    %v665 = vpack.c.bf16 %v645, %v641
    %v666 = vpack.c.bf16 %v646, %v642
    %v667 = vpack.c.bf16 %v647, %v647
    %v668 = vpack.c.bf16 %v648, %v648
    %v669 = vpack.c.bf16 %v649, %v649
    %v670 = vpack.c.bf16 %v650, %v650
    %v691 = vunpack.c.l.b16 %v651
    %v692 = vunpack.c.l.b16 %v652
    %v693 = vunpack.c.l.b16 %v653
    %v694 = vunpack.c.l.b16 %v654
    %v695 = vunpack.c.h.b16 %v651
    %v696 = vunpack.c.h.b16 %v652
    %v697 = vunpack.c.h.b16 %v653
    %v698 = vunpack.c.h.b16 %v654
    %v699 = vunpack.c.l.b16 %v655
    %v700 = vunpack.c.l.b16 %v656
    %v701 = vunpack.c.l.b16 %v657
    %v702 = vunpack.c.l.b16 %v658
    %v703 = vunpack.c.h.b16 %v655
    %v704 = vunpack.c.h.b16 %v656
    %v705 = vunpack.c.h.b16 %v657
    %v706 = vunpack.c.h.b16 %v658
    %v707 = vunpack.c.l.b16 %v659
    %v708 = vunpack.c.l.b16 %v660
    %v709 = vunpack.c.l.b16 %v661
    %v710 = vunpack.c.l.b16 %v662
    %v711 = vunpack.c.h.b16 %v659
    %v712 = vunpack.c.h.b16 %v660
    %v713 = vunpack.c.h.b16 %v661
    %v714 = vunpack.c.h.b16 %v662
    %v715 = vunpack.c.l.b16 %v663
    %v716 = vunpack.c.l.b16 %v664
    %v717 = vunpack.c.l.b16 %v665
    %v718 = vunpack.c.l.b16 %v666
    %v719 = vunpack.c.h.b16 %v663
    %v720 = vunpack.c.h.b16 %v664
    %v721 = vunpack.c.h.b16 %v665
    %v722 = vunpack.c.h.b16 %v666
    %v723 = vunpack.c.l.b16 %v667
    %v724 = vunpack.c.l.b16 %v668
    %v725 = vunpack.c.l.b16 %v669
    %v726 = vunpack.c.l.b16 %v670
    %v727 = vpack.c.b16 %v692, %v691
    %v728 = vpack.c.b16 %v694, %v693
    %v729 = vpack.c.b16 %v696, %v695
    %v730 = vpack.c.b16 %v698, %v697
    %v731 = vpack.c.b16 %v700, %v699
    %v732 = vpack.c.b16 %v702, %v701
    %v733 = vpack.c.b16 %v704, %v703
    %v734 = vpack.c.b16 %v706, %v705
    %v735 = vpack.c.b16 %v708, %v707
    %v736 = vpack.c.b16 %v710, %v709
    %v737 = vpack.c.b16 %v712, %v711
    %v738 = vpack.c.b16 %v714, %v713
    %v739 = vpack.c.b16 %v716, %v715
    %v740 = vpack.c.b16 %v718, %v717
    %v741 = vpack.c.b16 %v720, %v719
    %v742 = vpack.c.b16 %v722, %v721
    %v743 = vpack.c.b16 %v724, %v723
    %v744 = vpack.c.b16 %v726, %v725
    %763 = vst [vmem:[%s3] sm:$0xff] %v727
    %764 = vst [vmem:[%s3 + $0x8] sm:$0xff] %v728
    %765 = vst [vmem:[%s3 + $0x10] sm:$0xff] %v729
    %766 = vst [vmem:[%s3 + $0x18] sm:$0xff] %v730
    %767 = vst [vmem:[%s3 + $0x20] sm:$0xff] %v731
    %768 = vst [vmem:[%s3 + $0x28] sm:$0xff] %v732
    %769 = vst [vmem:[%s3 + $0x30] sm:$0xff] %v733
    %770 = vst [vmem:[%s3 + $0x38] sm:$0xff] %v734
    %771 = vst [vmem:[%s3 + $0x40] sm:$0xff] %v735
    %772 = vst [vmem:[%s3 + $0x48] sm:$0xff] %v736
    %773 = vst [vmem:[%s3 + $0x50] sm:$0xff] %v737
    %774 = vst [vmem:[%s3 + $0x58] sm:$0xff] %v738
    %775 = vst [vmem:[%s3 + $0x60] sm:$0xff] %v739
    %776 = vst [vmem:[%s3 + $0x68] sm:$0xff] %v740
    %777 = vst [vmem:[%s3 + $0x70] sm:$0xff] %v741
    %778 = vst [vmem:[%s3 + $0x78] sm:$0xff] %v742
    %779 = vst [vmem:[%s3 + $0x80] sm:$0xff] %v743
    %780 = vst [vmem:[%s3 + $0x88] sm:$0xff] %v744
  $region21: #{cnn_to_rnn_forward.9} parent=0 // pred_fallthru
    _
  // Predicated region
  $region22: #{cnn_to_rnn_forward.9} parent=0 // pred_check
    _
  $region23: #{cnn_to_rnn_forward.9} parent=0 // pred_check_branch
    %782 = sbr.rel (0) target = $region25
  $region24: #{cnn_to_rnn_forward.9} parent=0 // pred_region
    _
  $region25: #{cnn_to_rnn_forward.9} parent=0 // pred_fallthru
    _
  // Predicated region
  $region26: #{cnn_to_rnn_forward.9} parent=0 // pred_check
    _
  $region27: #{cnn_to_rnn_forward.9} parent=0 // pred_check_branch
    %784 = sbr.rel (0) target = $region29
  $region28: #{cnn_to_rnn_forward.9} parent=0 // pred_region
    _
  $region29: #{cnn_to_rnn_forward.9} parent=0 // pred_fallthru
    _

// kernel: cnn_to_rnn_forward.10
$region0: #{cnn_to_rnn_forward.10}
  #allocation0 [shape = 'u32[]', space=smem, size = 0x4, offset = 0x4, fixed_abs, tag = 'smem constant byte address 0x4 - core index']
  #allocation1 [shape = 'u32[144,128]{1,0:T(1,128)}', space=vmem, size = 0x12000, scoped, tag = 'internal scratch']
  #allocation2 [shape = 'bf16[128,512]{1,0:T(8,128)(2,1)}', space=vmem, size = 0x20000, scoped, tag = 'scratch operand']
  #allocation3 [shape = 's32[1]{0}', space=sflag, size = 0x4, scoped, tag = 'scratch operand']
  #allocation4 [shape = 'f32[8,128]{1,0:T(8,128)}', space=vmem, size = 0x1000, scoped, tag = 'scratch operand']
  #allocation5 [shape = 'f32[8,128]{1,0:T(8,128)}', space=vmem, size = 0x1000, scoped, tag = 'scratch operand']
  #allocation6 [shape = 's32[]', space=sflag, size = 0x4, offset = 0, fixed_abs, tag = 'sflag constant byte address 0x0 - dummy sync flag']
  %s0 = inlined_call_operand.vmem [shape: bf16[9,8,512], index: 0, kind: input, shape index: {}]
  %s1 = inlined_call_operand.vmem [shape: bf16[128,512], index: 1, kind: input, shape index: {}]
  %s2 = inlined_call_operand.vmem [shape: bf16[9,8,128], index: 2, kind: output, shape index: {}]
  %s3 = sld [smem:[#allocation0]]
  $region75: #{cnn_to_rnn_forward.10} parent=0
    _
  %s5 = ssub.s32 1, %s3
  %s6 = scalar_select 0, %s5, %s3
  loop: start=0, step=1, limit=5
  $region2: #{cnn_to_rnn_forward.10} parent=0 // loop_pre_header
    _
  $region3: #{cnn_to_rnn_forward.10} parent=0 // loop_header
    %s8 = sphi 0, %s12
    %p9 = scmp.ge.s32.totalorder %s8, 5
    %s15 = sphi 0, %s27
    %s16 = sphi 0, %s23
    %s17 = sphi 0, %s15
    %s18 = sphi 0, %s16
    %s19 = sphi 0, %s17
    %s20 = sphi 0, %s18
    %s32 = sphi 0, %s34
    %s35 = sphi 0, %s32
    %s36 = sphi 0, %s35
    %s52 = sphi 0, %s36
    %s60 = sphi 0, %s62
    %s63 = sphi 0, %s60
    %s64 = sphi 0, %s63
    %s80 = sphi 0, %s64
  $region4: #{cnn_to_rnn_forward.10} parent=0 // loop_header_branch
    %11 = sbr.rel (%p9) target = $region8
  $region5: #{cnn_to_rnn_forward.10} parent=0 // loop_body
    %s13 = ssub.s32 %s8, 1
    %s14 = ssub.s32 %s8, 2
    %s21 = sadd.s32 1, %s16
    %p22 = scmp.ge.s32.totalorder %s21, 3
    %s23 = scalar_select %p22, 0, %s21
    %s24 = sadd.s32 1, %s15
    %s25 = scalar_select %p22, %s24, %s15
    %p26 = scmp.ge.s32.totalorder %s25, 1
    %s27 = scalar_select %p26, 0, %s25
    %s28 = ssub.s32 %s16, %s23
    %s29 = ssub.s32 %s15, %s27
    %s30 = sor.u32 %s28, %s29
    %p31 = scmp.eq.s32.totalorder %s30, 0
    %s33 = sadd.s32 %s32, 1
    %s34 = scalar_select %p31, %s32, %s33
    %p37 = pneg %p31
    %p38 = scmp.eq.s32.totalorder %s8, 2
    %p39 = por %p37, %p38
    %p40 = scmp.ne.s32.totalorder %s32, %s35
    %p41 = scmp.eq.s32.totalorder %s8, 0
    %p42 = por %p40, %p41
    %p43 = scmp.ne.s32.totalorder %s32, %s35
    %p44 = scmp.eq.s32.totalorder %s13, 2
    %p45 = por %p43, %p44
    %p46 = scmp.ne.s32.totalorder %s35, %s36
    %p47 = scmp.eq.s32.totalorder %s13, 0
    %p48 = por %p46, %p47
    %p49 = scmp.ne.s32.totalorder %s35, %s36
    %p50 = scmp.eq.s32.totalorder %s14, 2
    %p51 = por %p49, %p50
    %p53 = scmp.ne.s32.totalorder %s36, %s52
    %p54 = scmp.eq.s32.totalorder %s14, 0
    %p55 = por %p53, %p54
    %s56 = ssub.s32 %s16, %s23
    %s57 = ssub.s32 %s15, %s27
    %s58 = sor.u32 %s56, %s57
    %p59 = scmp.eq.s32.totalorder %s58, 0
    %s61 = sadd.s32 %s60, 1
    %s62 = scalar_select %p59, %s60, %s61
    %p65 = pneg %p59
    %p66 = scmp.eq.s32.totalorder %s8, 2
    %p67 = por %p65, %p66
    %p68 = scmp.ne.s32.totalorder %s60, %s63
    %p69 = scmp.eq.s32.totalorder %s8, 0
    %p70 = por %p68, %p69
    %p71 = scmp.ne.s32.totalorder %s60, %s63
    %p72 = scmp.eq.s32.totalorder %s13, 2
    %p73 = por %p71, %p72
    %p74 = scmp.ne.s32.totalorder %s63, %s64
    %p75 = scmp.eq.s32.totalorder %s13, 0
    %p76 = por %p74, %p75
    %p77 = scmp.ne.s32.totalorder %s63, %s64
    %p78 = scmp.eq.s32.totalorder %s14, 2
    %p79 = por %p77, %p78
    %p81 = scmp.ne.s32.totalorder %s64, %s80
    %p82 = scmp.eq.s32.totalorder %s14, 0
    %p83 = por %p81, %p82
    %p84 = scmp.le.s32.totalorder 1, %s8
    %p85 = scmp.lt.s32.totalorder %s8, 4
    %p86 = pnand %p84, %p85
    %p87 = pneg %p86
    // Predicated region
    $region9: #{cnn_to_rnn_forward.10} parent=5 // pred_check
      _
    $region10: #{cnn_to_rnn_forward.10} parent=5 // pred_check_branch
      %89 = sbr.rel (%p86) target = $region12
    $region11: #{cnn_to_rnn_forward.10} parent=5 // pred_region
      %s90 = ssub.s32 %s8, 1
    $region12: #{cnn_to_rnn_forward.10} parent=5 // pred_fallthru
      _
    %p91 = scmp.lt.s32.totalorder %s8, 3
    // Predicated region
    $region13: #{cnn_to_rnn_forward.10} parent=5 // pred_check
      %p92 = pneg %p91
    $region14: #{cnn_to_rnn_forward.10} parent=5 // pred_check_branch
      %94 = sbr.rel (%p92) target = $region16
    $region15: #{cnn_to_rnn_forward.10} parent=5 // pred_region
      // Predicated region
      $region17: #{cnn_to_rnn_forward.10} parent=15 // pred_check
        %p95 = pneg %p42
      $region18: #{cnn_to_rnn_forward.10} parent=15 // pred_check_branch
        %97 = sbr.rel (%p95) target = $region20
      $region19: #{cnn_to_rnn_forward.10} parent=15 // pred_region
        %s98 = smul.u32 3, %s16
        %p99 = scmp.lt.s32.totalorder %s98, 8
        %s100 = scalar_select %p99, %s98, 8
        %p101 = scmp.lt.s32.totalorder %s15, 0
        %s102 = scalar_select %p101, %s15, 0
        %s103 = smul.addr %s102, 4
        %s104 = smul.addr %s100, 4
        %s105 = sadd.s32 %s103, %s104
        %s106 = smul.addr %s105, 4
        %s107 = scalar_lea.vmem %s0, %s106
        %s108 = smul.u32 3, %s16
      $region20: #{cnn_to_rnn_forward.10} parent=15 // pred_fallthru
        _
    $region16: #{cnn_to_rnn_forward.10} parent=5 // pred_fallthru
      _
    %p109 = scmp.le.s32.totalorder 1, %s8
    %p110 = scmp.lt.s32.totalorder %s8, 4
    %p111 = pnand %p109, %p110
    %p112 = pneg %p111
    // Predicated region
    $region21: #{cnn_to_rnn_forward.10} parent=5 // pred_check
      _
    $region22: #{cnn_to_rnn_forward.10} parent=5 // pred_check_branch
      %114 = sbr.rel (%p111) target = $region24
    $region23: #{cnn_to_rnn_forward.10} parent=5 // pred_region
      %s115 = ssub.s32 %s8, 1
      %s116 = smul.u32 3, %s18
      %p117 = scmp.lt.s32.totalorder %s116, 8
      %s118 = scalar_select %p117, %s116, 8
      %p119 = scmp.lt.s32.totalorder %s17, 0
      %s120 = scalar_select %p119, %s17, 0
      %s121 = smul.addr %s120, 4
      %s122 = smul.addr %s118, 4
      %s123 = sadd.s32 %s121, %s122
      %s124 = smul.addr %s123, 4
      %s125 = scalar_lea.vmem %s0, %s124
      %p126 = pneg %p48
      %p127 = pneg %p45
      %p128 = pneg %p76
      %p129 = pneg %p73
      %s130 = smul.u32 3, %s18
      %p131 = scmp.lt.s32.totalorder %s130, 8
      %s132 = scalar_select %p131, %s130, 8
      %p133 = scmp.lt.s32.totalorder %s17, 0
      %s134 = scalar_select %p133, %s17, 0
      %s135 = sadd.s32 %s134, %s132
      %s136 = smul.addr %s135, 4
      %s137 = scalar_lea.vmem %s2, %s136
      %s138 = smul.u32 3, %s18
      %p139 = scmp.lt.s32.totalorder %s138, 8
      %s140 = scalar_select %p139, %s138, 8
      %p141 = scmp.lt.s32.totalorder %s17, 0
      %s142 = scalar_select %p141, %s17, 0
      %s143 = smul.addr %s142, 4
      %s144 = smul.addr %s140, 4
      %s145 = sadd.s32 %s143, %s144
      %s146 = smul.addr %s145, 4
      %s147 = scalar_lea.vmem %s0, %s146
      %s148 = smul.u32 3, %s18
      %s149 = smul.u32 3, %s18
      %p150 = scmp.lt.s32.totalorder %s149, 8
      %s151 = scalar_select %p150, %s149, 8
      %p152 = scmp.lt.s32.totalorder %s17, 0
      %s153 = scalar_select %p152, %s17, 0
      %s154 = sadd.s32 %s153, %s151
      %s155 = smul.addr %s154, 4
      %s156 = scalar_lea.vmem %s2, %s155
      %s157 = smul.u32 3, %s18
      %p159 = scmp.eq.s32.totalorder %s18, 0
      // Predicated region
      $region25: #{cnn_to_rnn_forward.10} parent=23 // pred_check
        %p160 = pneg %p159
      $region26: #{cnn_to_rnn_forward.10} parent=23 // pred_check_branch
        %162 = sbr.rel (%p160) target = $region28
      $region27: #{cnn_to_rnn_forward.10} parent=23 // pred_region
        %p164 = scmp.lt.u32.totalorder 256, 8
        %p165 = pneg %p164
        // Predicated region
        $region29: #{cnn_to_rnn_forward.10} parent=27 // pred_check
          _
        $region30: #{cnn_to_rnn_forward.10} parent=27 // pred_check_branch
          %167 = sbr.rel (%p164) target = $region32
        $region31: #{cnn_to_rnn_forward.10} parent=27 // pred_region
          %s183 = sand.u32 256, 7
          %p184 = scmp.eq.s32.totalorder %s183, 0
          // Predicated region
          $region44: #{cnn_to_rnn_forward.10} parent=31 // pred_check
            %p185 = pneg %p184
          $region45: #{cnn_to_rnn_forward.10} parent=31 // pred_check_branch
            %187 = sbr.rel (%p185) target = $region47
          $region46: #{cnn_to_rnn_forward.10} parent=31 // pred_region
            loop: start=0, step=1, limit=1
            $region48: #{cnn_to_rnn_forward.10} parent=46 // loop_pre_header
              _
            $region49: #{cnn_to_rnn_forward.10} parent=46 // loop_header
              %s189 = sphi 0, %s193
              %p190 = scmp.ge.s32.totalorder %s189, 1
              %s194 = sphi %s1, %s1
              %s195 = sphi [#allocation2], [#allocation2]
            $region50: #{cnn_to_rnn_forward.10} parent=46 // loop_header_branch
              %192 = sbr.rel (%p190) target = $region54
            $region51: #{cnn_to_rnn_forward.10} parent=46 // loop_body
              %v196 = vld [vmem:[%s194] sm:$0xff]
              %197 = vst [vmem:[%s195] sm:$0xff] %v196
              %v198 = vld [vmem:[%s194 + $0x8] sm:$0xff]
              %199 = vst [vmem:[%s195 + $0x8] sm:$0xff] %v198
              %v200 = vld [vmem:[%s194 + $0x10] sm:$0xff]
              %201 = vst [vmem:[%s195 + $0x10] sm:$0xff] %v200
              %v202 = vld [vmem:[%s194 + $0x18] sm:$0xff]
              %203 = vst [vmem:[%s195 + $0x18] sm:$0xff] %v202
              %v204 = vld [vmem:[%s194 + $0x20] sm:$0xff]
              %205 = vst [vmem:[%s195 + $0x20] sm:$0xff] %v204
              %v206 = vld [vmem:[%s194 + $0x28] sm:$0xff]
              %207 = vst [vmem:[%s195 + $0x28] sm:$0xff] %v206
              %v208 = vld [vmem:[%s194 + $0x30] sm:$0xff]
              %209 = vst [vmem:[%s195 + $0x30] sm:$0xff] %v208
              %v210 = vld [vmem:[%s194 + $0x38] sm:$0xff]
              %211 = vst [vmem:[%s195 + $0x38] sm:$0xff] %v210
              %v212 = vld [vmem:[%s194 + $0x40] sm:$0xff]
              %213 = vst [vmem:[%s195 + $0x40] sm:$0xff] %v212
              %v214 = vld [vmem:[%s194 + $0x48] sm:$0xff]
              %215 = vst [vmem:[%s195 + $0x48] sm:$0xff] %v214
              %v216 = vld [vmem:[%s194 + $0x50] sm:$0xff]
              %217 = vst [vmem:[%s195 + $0x50] sm:$0xff] %v216
              %v218 = vld [vmem:[%s194 + $0x58] sm:$0xff]
              %219 = vst [vmem:[%s195 + $0x58] sm:$0xff] %v218
              %v220 = vld [vmem:[%s194 + $0x60] sm:$0xff]
              %221 = vst [vmem:[%s195 + $0x60] sm:$0xff] %v220
              %v222 = vld [vmem:[%s194 + $0x68] sm:$0xff]
              %223 = vst [vmem:[%s195 + $0x68] sm:$0xff] %v222
              %v224 = vld [vmem:[%s194 + $0x70] sm:$0xff]
              %225 = vst [vmem:[%s195 + $0x70] sm:$0xff] %v224
              %v226 = vld [vmem:[%s194 + $0x78] sm:$0xff]
              %227 = vst [vmem:[%s195 + $0x78] sm:$0xff] %v226
              %v228 = vld [vmem:[%s194 + $0x80] sm:$0xff]
              %229 = vst [vmem:[%s195 + $0x80] sm:$0xff] %v228
              %v230 = vld [vmem:[%s194 + $0x88] sm:$0xff]
              %231 = vst [vmem:[%s195 + $0x88] sm:$0xff] %v230
              %v232 = vld [vmem:[%s194 + $0x90] sm:$0xff]
              %233 = vst [vmem:[%s195 + $0x90] sm:$0xff] %v232
              %v234 = vld [vmem:[%s194 + $0x98] sm:$0xff]
              %235 = vst [vmem:[%s195 + $0x98] sm:$0xff] %v234
              %v236 = vld [vmem:[%s194 + $0xa0] sm:$0xff]
              %237 = vst [vmem:[%s195 + $0xa0] sm:$0xff] %v236
              %v238 = vld [vmem:[%s194 + $0xa8] sm:$0xff]
              %239 = vst [vmem:[%s195 + $0xa8] sm:$0xff] %v238
              %v240 = vld [vmem:[%s194 + $0xb0] sm:$0xff]
              %241 = vst [vmem:[%s195 + $0xb0] sm:$0xff] %v240
              %v242 = vld [vmem:[%s194 + $0xb8] sm:$0xff]
              %243 = vst [vmem:[%s195 + $0xb8] sm:$0xff] %v242
              %v244 = vld [vmem:[%s194 + $0xc0] sm:$0xff]
              %245 = vst [vmem:[%s195 + $0xc0] sm:$0xff] %v244
              %v246 = vld [vmem:[%s194 + $0xc8] sm:$0xff]
              %247 = vst [vmem:[%s195 + $0xc8] sm:$0xff] %v246
              %v248 = vld [vmem:[%s194 + $0xd0] sm:$0xff]
              %249 = vst [vmem:[%s195 + $0xd0] sm:$0xff] %v248
              %v250 = vld [vmem:[%s194 + $0xd8] sm:$0xff]
              %251 = vst [vmem:[%s195 + $0xd8] sm:$0xff] %v250
              %v252 = vld [vmem:[%s194 + $0xe0] sm:$0xff]
              %253 = vst [vmem:[%s195 + $0xe0] sm:$0xff] %v252
              %v254 = vld [vmem:[%s194 + $0xe8] sm:$0xff]
              %255 = vst [vmem:[%s195 + $0xe8] sm:$0xff] %v254
              %v256 = vld [vmem:[%s194 + $0xf0] sm:$0xff]
              %257 = vst [vmem:[%s195 + $0xf0] sm:$0xff] %v256
              %v258 = vld [vmem:[%s194 + $0xf8] sm:$0xff]
              %259 = vst [vmem:[%s195 + $0xf8] sm:$0xff] %v258
            $region52: #{cnn_to_rnn_forward.10} parent=46 // loop_footer
              %s193 = sadd.s32 1, %s189
            $region53: #{cnn_to_rnn_forward.10} parent=46 // loop_footer_branch
              %188 = sbr.rel target = $region49
            $region54: #{cnn_to_rnn_forward.10} parent=46 // loop_exit
              _
          $region47: #{cnn_to_rnn_forward.10} parent=31 // pred_fallthru
            _
          %p260 = pneg %p184
          // Predicated region
          $region55: #{cnn_to_rnn_forward.10} parent=31 // pred_check
            _
          $region56: #{cnn_to_rnn_forward.10} parent=31 // pred_check_branch
            %262 = sbr.rel (%p184) target = $region58
          $region57: #{cnn_to_rnn_forward.10} parent=31 // pred_region
            %s263 = sand.u32 256, 7
          $region58: #{cnn_to_rnn_forward.10} parent=31 // pred_fallthru
            _
        $region32: #{cnn_to_rnn_forward.10} parent=27 // pred_fallthru
          _
        // Predicated region
        $region33: #{cnn_to_rnn_forward.10} parent=27 // pred_check
          %p168 = pneg %p164
        $region34: #{cnn_to_rnn_forward.10} parent=27 // pred_check_branch
          %170 = sbr.rel (%p168) target = $region36
        $region35: #{cnn_to_rnn_forward.10} parent=27 // pred_region
          %s171 = sshll.u32 1, 256
          %s172 = ssub.s32 %s171, 1
          loop: start=0, step=1, limit=1
          $region37: #{cnn_to_rnn_forward.10} parent=35 // loop_pre_header
            _
          $region38: #{cnn_to_rnn_forward.10} parent=35 // loop_header
            %s174 = sphi 0, %s178
            %p175 = scmp.ge.s32.totalorder %s174, 1
            %s179 = sphi %s1, %s1
            %s180 = sphi [#allocation2], [#allocation2]
          $region39: #{cnn_to_rnn_forward.10} parent=35 // loop_header_branch
            %177 = sbr.rel (%p175) target = $region43
          $region40: #{cnn_to_rnn_forward.10} parent=35 // loop_body
            %v181 = vld [vmem:[%s179] sm:%s172]
            %182 = vst [vmem:[%s180] sm:%s172] %v181
          $region41: #{cnn_to_rnn_forward.10} parent=35 // loop_footer
            %s178 = sadd.s32 1, %s174
          $region42: #{cnn_to_rnn_forward.10} parent=35 // loop_footer_branch
            %173 = sbr.rel target = $region38
          $region43: #{cnn_to_rnn_forward.10} parent=35 // loop_exit
            _
        $region36: #{cnn_to_rnn_forward.10} parent=27 // pred_fallthru
          _
        // Predicated region
        $region59: #{cnn_to_rnn_forward.10} parent=27 // pred_check
          _
        $region60: #{cnn_to_rnn_forward.10} parent=27 // pred_check_branch
          %266 = sbr.rel (0) target = $region62
        $region61: #{cnn_to_rnn_forward.10} parent=27 // pred_region
          %267 = vsyncadd [#allocation3], 4096
        $region62: #{cnn_to_rnn_forward.10} parent=27 // pred_fallthru
          _
        %268 = vst [vmem:[#allocation4] sm:$0xff] 0.0
        %269 = vst [vmem:[#allocation5] sm:$0xff] 0.0
        %s270 = smul.u32 4, 16
        %s271 = smul.u32 %s270, 4
        %s272 = sshll.u32 %s271, 4
        %273 = dma.done [#allocation3], %s272
      $region28: #{cnn_to_rnn_forward.10} parent=23 // pred_fallthru
        _
      %v274 = vld [vmem:[#allocation2] sm:$0xff]
      %v275 = vld [vmem:[#allocation2 + $0x8] sm:$0xff]
      %v276 = vld [vmem:[#allocation2 + $0x10] sm:$0xff]
      %v277 = vld [vmem:[#allocation2 + $0x18] sm:$0xff]
      %v278 = vld [vmem:[#allocation2 + $0x20] sm:$0xff]
      %v279 = vld [vmem:[#allocation2 + $0x28] sm:$0xff]
      %v280 = vld [vmem:[#allocation2 + $0x30] sm:$0xff]
      %v281 = vld [vmem:[#allocation2 + $0x38] sm:$0xff]
      %v282 = vld [vmem:[#allocation2 + $0x40] sm:$0xff]
      %v283 = vld [vmem:[#allocation2 + $0x48] sm:$0xff]
      %v284 = vld [vmem:[#allocation2 + $0x50] sm:$0xff]
      %v285 = vld [vmem:[#allocation2 + $0x58] sm:$0xff]
      %v286 = vld [vmem:[#allocation2 + $0x60] sm:$0xff]
      %v287 = vld [vmem:[#allocation2 + $0x68] sm:$0xff]
      %v288 = vld [vmem:[#allocation2 + $0x70] sm:$0xff]
      %v289 = vld [vmem:[#allocation2 + $0x78] sm:$0xff]
      %v290 = vld [vmem:[#allocation2 + $0x80] sm:$0xff]
      %v291 = vld [vmem:[#allocation2 + $0x88] sm:$0xff]
      %v292 = vld [vmem:[#allocation2 + $0x90] sm:$0xff]
      %v293 = vld [vmem:[#allocation2 + $0x98] sm:$0xff]
      %v294 = vld [vmem:[#allocation2 + $0xa0] sm:$0xff]
      %v295 = vld [vmem:[#allocation2 + $0xa8] sm:$0xff]
      %v296 = vld [vmem:[#allocation2 + $0xb0] sm:$0xff]
      %v297 = vld [vmem:[#allocation2 + $0xb8] sm:$0xff]
      %v298 = vld [vmem:[#allocation2 + $0xc0] sm:$0xff]
      %v299 = vld [vmem:[#allocation2 + $0xc8] sm:$0xff]
      %v300 = vld [vmem:[#allocation2 + $0xd0] sm:$0xff]
      %v301 = vld [vmem:[#allocation2 + $0xd8] sm:$0xff]
      %v302 = vld [vmem:[#allocation2 + $0xe0] sm:$0xff]
      %v303 = vld [vmem:[#allocation2 + $0xe8] sm:$0xff]
      %v304 = vld [vmem:[#allocation2 + $0xf0] sm:$0xff]
      %v305 = vld [vmem:[#allocation2 + $0xf8] sm:$0xff]
      %v306 = vld [vmem:[#allocation4] sm:$0xff]
      %v307 = vld [vmem:[#allocation5] sm:$0xff]
      %v308 = vld [vmem:[%s147] sm:$0xff]
      %v309 = vld [vmem:[%s147 + $0x8] sm:$0xff]
      %v310 = vunpack.c.l.bf16 %v308
      %v311 = vunpack.c.h.bf16 %v308
      %v312 = vunpack.c.l.bf16 %v309
      %v313 = vunpack.c.h.bf16 %v309
      %v314 = vpack.c.bf16 %v306, %v306
      %v347 = vunpack.c.l.b16 %v274
      %v348 = vunpack.c.h.b16 %v274
      %v349 = vunpack.c.l.b16 %v275
      %v350 = vunpack.c.h.b16 %v275
      %v351 = vunpack.c.l.b16 %v276
      %v352 = vunpack.c.h.b16 %v276
      %v353 = vunpack.c.l.b16 %v277
      %v354 = vunpack.c.h.b16 %v277
      %v355 = vunpack.c.l.b16 %v278
      %v356 = vunpack.c.h.b16 %v278
      %v357 = vunpack.c.l.b16 %v279
      %v358 = vunpack.c.h.b16 %v279
      %v359 = vunpack.c.l.b16 %v280
      %v360 = vunpack.c.h.b16 %v280
      %v361 = vunpack.c.l.b16 %v281
      %v362 = vunpack.c.h.b16 %v281
      %v363 = vunpack.c.l.b16 %v282
      %v364 = vunpack.c.h.b16 %v282
      %v365 = vunpack.c.l.b16 %v283
      %v366 = vunpack.c.h.b16 %v283
      %v367 = vunpack.c.l.b16 %v284
      %v368 = vunpack.c.h.b16 %v284
      %v369 = vunpack.c.l.b16 %v285
      %v370 = vunpack.c.h.b16 %v285
      %v371 = vunpack.c.l.b16 %v286
      %v372 = vunpack.c.h.b16 %v286
      %v373 = vunpack.c.l.b16 %v287
      %v374 = vunpack.c.h.b16 %v287
      %v375 = vunpack.c.l.b16 %v288
      %v376 = vunpack.c.h.b16 %v288
      %v377 = vunpack.c.l.b16 %v289
      %v378 = vunpack.c.h.b16 %v289
      %v379 = vunpack.c.l.b16 %v290
      %v380 = vunpack.c.h.b16 %v290
      %v381 = vunpack.c.l.b16 %v291
      %v382 = vunpack.c.h.b16 %v291
      %v383 = vunpack.c.l.b16 %v292
      %v384 = vunpack.c.h.b16 %v292
      %v385 = vunpack.c.l.b16 %v293
      %v386 = vunpack.c.h.b16 %v293
      %v387 = vunpack.c.l.b16 %v294
      %v388 = vunpack.c.h.b16 %v294
      %v389 = vunpack.c.l.b16 %v295
      %v390 = vunpack.c.h.b16 %v295
      %v391 = vunpack.c.l.b16 %v296
      %v392 = vunpack.c.h.b16 %v296
      %v393 = vunpack.c.l.b16 %v297
      %v394 = vunpack.c.h.b16 %v297
      %v395 = vunpack.c.l.b16 %v298
      %v396 = vunpack.c.h.b16 %v298
      %v397 = vunpack.c.l.b16 %v299
      %v398 = vunpack.c.h.b16 %v299
      %v399 = vunpack.c.l.b16 %v300
      %v400 = vunpack.c.h.b16 %v300
      %v401 = vunpack.c.l.b16 %v301
      %v402 = vunpack.c.h.b16 %v301
      %v403 = vunpack.c.l.b16 %v302
      %v404 = vunpack.c.h.b16 %v302
      %v405 = vunpack.c.l.b16 %v303
      %v406 = vunpack.c.h.b16 %v303
      %v407 = vunpack.c.l.b16 %v304
      %v408 = vunpack.c.h.b16 %v304
      %v409 = vunpack.c.l.b16 %v305
      %v410 = vunpack.c.h.b16 %v305
      %v411 = vpack.c.b16 %v351, %v347
      %v412 = vpack.c.b16 %v352, %v348
      %v413 = vpack.c.b16 %v353, %v349
      %v414 = vpack.c.b16 %v354, %v350
      %v415 = vpack.c.b16 %v359, %v355
      %v416 = vpack.c.b16 %v360, %v356
      %v417 = vpack.c.b16 %v361, %v357
      %v418 = vpack.c.b16 %v362, %v358
      %v419 = vpack.c.b16 %v367, %v363
      %v420 = vpack.c.b16 %v368, %v364
      %v421 = vpack.c.b16 %v369, %v365
      %v422 = vpack.c.b16 %v370, %v366
      %v423 = vpack.c.b16 %v375, %v371
      %v424 = vpack.c.b16 %v376, %v372
      %v425 = vpack.c.b16 %v377, %v373
      %v426 = vpack.c.b16 %v378, %v374
      %v427 = vpack.c.b16 %v383, %v379
      %v428 = vpack.c.b16 %v384, %v380
      %v429 = vpack.c.b16 %v385, %v381
      %v430 = vpack.c.b16 %v386, %v382
      %v431 = vpack.c.b16 %v391, %v387
      %v432 = vpack.c.b16 %v392, %v388
      %v433 = vpack.c.b16 %v393, %v389
      %v434 = vpack.c.b16 %v394, %v390
      %v435 = vpack.c.b16 %v399, %v395
      %v436 = vpack.c.b16 %v400, %v396
      %v437 = vpack.c.b16 %v401, %v397
      %v438 = vpack.c.b16 %v402, %v398
      %v439 = vpack.c.b16 %v407, %v403
      %v440 = vpack.c.b16 %v408, %v404
      %v441 = vpack.c.b16 %v409, %v405
      %v442 = vpack.c.b16 %v410, %v406
      %475 = vmatprep.subr.bf16.mxu0 %v440
      %476 = vmatpush1.bf16.msra.mxu0 %v439
      %477 = vmatprep.subr.bf16.mxu0 %v436
      %478 = vmatpush1.bf16.msra.mxu0 %v435
      %479 = vmatprep.subr.bf16.mxu0 %v432
      %480 = vmatpush1.bf16.msra.mxu0 %v431
      %481 = vmatprep.subr.bf16.mxu0 %v428
      %482 = vmatpush1.bf16.msra.mxu0 %v427
      %483 = vmatprep.subr.bf16.mxu0 %v424
      %484 = vmatpush1.bf16.msra.mxu0 %v423
      %485 = vmatprep.subr.bf16.mxu0 %v420
      %486 = vmatpush1.bf16.msra.mxu0 %v419
      %487 = vmatprep.subr.bf16.mxu0 %v416
      %488 = vmatpush1.bf16.msra.mxu0 %v415
      %489 = vmatprep.subr.bf16.mxu0 %v412
      %490 = vmatpush1.bf16.msra.mxu0 %v411
      %491 = vmatprep.subr.bf16.mxu0 0
      %492 = vmatpush2.bf16.msra.mxu0 0
      %493 = vmatprep.subr.bf16.mxu0 0
      %494 = vmatpush2.bf16.msra.mxu0 0
      %495 = vmatprep.subr.bf16.mxu0 0
      %496 = vmatpush2.bf16.msra.mxu0 0
      %497 = vmatprep.subr.bf16.mxu0 0
      %498 = vmatpush2.bf16.msra.mxu0 0
      %499 = vmatprep.subr.bf16.mxu0 0
      %500 = vmatpush2.bf16.msra.mxu0 0
      %501 = vmatprep.subr.bf16.mxu0 0
      %502 = vmatpush2.bf16.msra.mxu0 0
      %503 = vmatprep.subr.bf16.mxu0 0
      %504 = vmatpush2.bf16.msra.mxu0 0
      %505 = vmatprep.subr.bf16.mxu0 0
      %506 = vmatpush2.bf16.msra.mxu0 0
      %507 = vmatprep.mubr.bf16.mxu0 0
      %508 = vmatmul.mubr.bf16.gmra.mxu0 %v314
      %v509 = vpop.f32.mrf.mxu0
      %v510 = vadd.f32 0.0, %v509
      %v511 = vpop.f32.mrf.mxu0
      %v512 = vadd.f32 0.0, %v511
      %v513 = vpop.f32.mrf.mxu0
      %v514 = vpop.f32.mrf.mxu0
      %515 = vdwg.mxu0
      %516 = vmatprep.subr.bf16.mxu0 %v442
      %517 = vmatpush1.bf16.msra.mxu0 %v441
      %518 = vmatprep.subr.bf16.mxu0 %v438
      %519 = vmatpush1.bf16.msra.mxu0 %v437
      %520 = vmatprep.subr.bf16.mxu0 %v434
      %521 = vmatpush1.bf16.msra.mxu0 %v433
      %522 = vmatprep.subr.bf16.mxu0 %v430
      %523 = vmatpush1.bf16.msra.mxu0 %v429
      %524 = vmatprep.subr.bf16.mxu0 %v426
      %525 = vmatpush1.bf16.msra.mxu0 %v425
      %526 = vmatprep.subr.bf16.mxu0 %v422
      %527 = vmatpush1.bf16.msra.mxu0 %v421
      %528 = vmatprep.subr.bf16.mxu0 %v418
      %529 = vmatpush1.bf16.msra.mxu0 %v417
      %530 = vmatprep.subr.bf16.mxu0 %v414
      %531 = vmatpush1.bf16.msra.mxu0 %v413
      %532 = vmatprep.subr.bf16.mxu0 0
      %533 = vmatpush2.bf16.msra.mxu0 0
      %534 = vmatprep.subr.bf16.mxu0 0
      %535 = vmatpush2.bf16.msra.mxu0 0
      %536 = vmatprep.subr.bf16.mxu0 0
      %537 = vmatpush2.bf16.msra.mxu0 0
      %538 = vmatprep.subr.bf16.mxu0 0
      %539 = vmatpush2.bf16.msra.mxu0 0
      %540 = vmatprep.subr.bf16.mxu0 0
      %541 = vmatpush2.bf16.msra.mxu0 0
      %542 = vmatprep.subr.bf16.mxu0 0
      %543 = vmatpush2.bf16.msra.mxu0 0
      %544 = vmatprep.subr.bf16.mxu0 0
      %545 = vmatpush2.bf16.msra.mxu0 0
      %546 = vmatprep.subr.bf16.mxu0 0
      %547 = vmatpush2.bf16.msra.mxu0 0
      %548 = vmatprep.mubr.bf16.mxu0 0
      %549 = vmatmul.mubr.bf16.gmra.mxu0 %v314
      %v550 = vpop.f32.mrf.mxu0
      %v551 = vadd.f32 0.0, %v550
      %v552 = vpop.f32.mrf.mxu0
      %v553 = vadd.f32 0.0, %v552
      %v554 = vpop.f32.mrf.mxu0
      %v555 = vpop.f32.mrf.mxu0
      %556 = vdwg.mxu0
      %v557 = vadd.f32 %v310, %v510
      %v558 = vadd.f32 %v311, %v512
      %v559 = vadd.f32 %v312, %v551
      %v560 = vadd.f32 %v313, %v553
      %v561 = vxor.u32 %v557, 2147483648
      %v562 = vmul.f32 %v561, 1.442695
      %v563 = vpow.pop %v562
      %v564 = vadd.f32 %v563, 1.0
      %v565 = vrcp.pop %v564
      %v566 = vmul.f32 1.0, %v565
      %v567 = vxor.u32 %v558, 2147483648
      %v568 = vmul.f32 %v567, 1.442695
      %v569 = vpow.pop %v568
      %v570 = vadd.f32 %v569, 1.0
      %v571 = vrcp.pop %v570
      %v572 = vmul.f32 1.0, %v571
      %v573 = vtanh.pop %v559
      %v574 = vxor.u32 %v560, 2147483648
      %v575 = vmul.f32 %v574, 1.442695
      %v576 = vpow.pop %v575
      %v577 = vadd.f32 %v576, 1.0
      %v578 = vrcp.pop %v577
      %v579 = vmul.f32 1.0, %v578
      %v580 = vmul.f32 %v572, %v307
      %v581 = vmul.f32 %v566, %v573
      %v582 = vadd.f32 %v580, %v581
      %v583 = vtanh.pop %v582
      %v584 = vmul.f32 %v579, %v583
      %v585 = vpack.c.bf16 %v584, %v584
      %586 = vst [vmem:[%s156] sm:$0xf] %v585
      %s587 = scalar_lea.vmem %s147, 16
      %v588 = vld [vmem:[%s587] sm:$0xff]
      %v589 = vld [vmem:[%s587 + $0x8] sm:$0xff]
      %v590 = vunpack.c.l.bf16 %v588
      %v591 = vunpack.c.h.bf16 %v588
      %v592 = vunpack.c.l.bf16 %v589
      %v593 = vunpack.c.h.bf16 %v589
      %594 = vmatprep.subr.bf16.mxu0 %v440
      %595 = vmatpush1.bf16.msra.mxu0 %v439
      %596 = vmatprep.subr.bf16.mxu0 %v436
      %597 = vmatpush1.bf16.msra.mxu0 %v435
      %598 = vmatprep.subr.bf16.mxu0 %v432
      %599 = vmatpush1.bf16.msra.mxu0 %v431
      %600 = vmatprep.subr.bf16.mxu0 %v428
      %601 = vmatpush1.bf16.msra.mxu0 %v427
      %602 = vmatprep.subr.bf16.mxu0 %v424
      %603 = vmatpush1.bf16.msra.mxu0 %v423
      %604 = vmatprep.subr.bf16.mxu0 %v420
      %605 = vmatpush1.bf16.msra.mxu0 %v419
      %606 = vmatprep.subr.bf16.mxu0 %v416
      %607 = vmatpush1.bf16.msra.mxu0 %v415
      %608 = vmatprep.subr.bf16.mxu0 %v412
      %609 = vmatpush1.bf16.msra.mxu0 %v411
      %610 = vmatprep.subr.bf16.mxu0 0
      %611 = vmatpush2.bf16.msra.mxu0 0
      %612 = vmatprep.subr.bf16.mxu0 0
      %613 = vmatpush2.bf16.msra.mxu0 0
      %614 = vmatprep.subr.bf16.mxu0 0
      %615 = vmatpush2.bf16.msra.mxu0 0
      %616 = vmatprep.subr.bf16.mxu0 0
      %617 = vmatpush2.bf16.msra.mxu0 0
      %618 = vmatprep.subr.bf16.mxu0 0
      %619 = vmatpush2.bf16.msra.mxu0 0
      %620 = vmatprep.subr.bf16.mxu0 0
      %621 = vmatpush2.bf16.msra.mxu0 0
      %622 = vmatprep.subr.bf16.mxu0 0
      %623 = vmatpush2.bf16.msra.mxu0 0
      %624 = vmatprep.subr.bf16.mxu0 0
      %625 = vmatpush2.bf16.msra.mxu0 0
      %626 = vmatprep.mubr.bf16.mxu0 0
      %627 = vmatmul.mubr.bf16.gmra.mxu0 %v585
      %v628 = vpop.f32.mrf.mxu0
      %v629 = vadd.f32 0.0, %v628
      %v630 = vpop.f32.mrf.mxu0
      %v631 = vadd.f32 0.0, %v630
      %v632 = vpop.f32.mrf.mxu0
      %v633 = vpop.f32.mrf.mxu0
      %634 = vdwg.mxu0
      %635 = vmatprep.subr.bf16.mxu0 %v442
      %636 = vmatpush1.bf16.msra.mxu0 %v441
      %637 = vmatprep.subr.bf16.mxu0 %v438
      %638 = vmatpush1.bf16.msra.mxu0 %v437
      %639 = vmatprep.subr.bf16.mxu0 %v434
      %640 = vmatpush1.bf16.msra.mxu0 %v433
      %641 = vmatprep.subr.bf16.mxu0 %v430
      %642 = vmatpush1.bf16.msra.mxu0 %v429
      %643 = vmatprep.subr.bf16.mxu0 %v426
      %644 = vmatpush1.bf16.msra.mxu0 %v425
      %645 = vmatprep.subr.bf16.mxu0 %v422
      %646 = vmatpush1.bf16.msra.mxu0 %v421
      %647 = vmatprep.subr.bf16.mxu0 %v418
      %648 = vmatpush1.bf16.msra.mxu0 %v417
      %649 = vmatprep.subr.bf16.mxu0 %v414
      %650 = vmatpush1.bf16.msra.mxu0 %v413
      %651 = vmatprep.subr.bf16.mxu0 0
      %652 = vmatpush2.bf16.msra.mxu0 0
      %653 = vmatprep.subr.bf16.mxu0 0
      %654 = vmatpush2.bf16.msra.mxu0 0
      %655 = vmatprep.subr.bf16.mxu0 0
      %656 = vmatpush2.bf16.msra.mxu0 0
      %657 = vmatprep.subr.bf16.mxu0 0
      %658 = vmatpush2.bf16.msra.mxu0 0
      %659 = vmatprep.subr.bf16.mxu0 0
      %660 = vmatpush2.bf16.msra.mxu0 0
      %661 = vmatprep.subr.bf16.mxu0 0
      %662 = vmatpush2.bf16.msra.mxu0 0
      %663 = vmatprep.subr.bf16.mxu0 0
      %664 = vmatpush2.bf16.msra.mxu0 0
      %665 = vmatprep.subr.bf16.mxu0 0
      %666 = vmatpush2.bf16.msra.mxu0 0
      %667 = vmatprep.mubr.bf16.mxu0 0
      %668 = vmatmul.mubr.bf16.gmra.mxu0 %v585
      %v669 = vpop.f32.mrf.mxu0
      %v670 = vadd.f32 0.0, %v669
      %v671 = vpop.f32.mrf.mxu0
      %v672 = vadd.f32 0.0, %v671
      %v673 = vpop.f32.mrf.mxu0
      %v674 = vpop.f32.mrf.mxu0
      %675 = vdwg.mxu0
      %v676 = vadd.f32 %v590, %v629
      %v677 = vadd.f32 %v591, %v631
      %v678 = vadd.f32 %v592, %v670
      %v679 = vadd.f32 %v593, %v672
      %v680 = vxor.u32 %v676, 2147483648
      %v681 = vmul.f32 %v680, 1.442695
      %v682 = vpow.pop %v681
      %v683 = vadd.f32 %v682, 1.0
      %v684 = vrcp.pop %v683
      %v685 = vmul.f32 1.0, %v684
      %v686 = vxor.u32 %v677, 2147483648
      %v687 = vmul.f32 %v686, 1.442695
      %v688 = vpow.pop %v687
      %v689 = vadd.f32 %v688, 1.0
      %v690 = vrcp.pop %v689
      %v691 = vmul.f32 1.0, %v690
      %v692 = vtanh.pop %v678
      %v693 = vxor.u32 %v679, 2147483648
      %v694 = vmul.f32 %v693, 1.442695
      %v695 = vpow.pop %v694
      %v696 = vadd.f32 %v695, 1.0
      %v697 = vrcp.pop %v696
      %v698 = vmul.f32 1.0, %v697
      %v699 = vmul.f32 %v691, %v582
      %v700 = vmul.f32 %v685, %v692
      %v701 = vadd.f32 %v699, %v700
      %v702 = vtanh.pop %v701
      %v703 = vmul.f32 %v698, %v702
      %v704 = vpack.c.bf16 %v703, %v703
      %s705 = scalar_lea.vmem %s156, 4
      %706 = vst [vmem:[%s705] sm:$0xf] %v704
      %s707 = scalar_lea.vmem %s147, 32
      %v708 = vld [vmem:[%s707] sm:$0xff]
      %v709 = vld [vmem:[%s707 + $0x8] sm:$0xff]
      %v710 = vunpack.c.l.bf16 %v708
      %v711 = vunpack.c.h.bf16 %v708
      %v712 = vunpack.c.l.bf16 %v709
      %v713 = vunpack.c.h.bf16 %v709
      %714 = vmatprep.subr.bf16.mxu0 %v440
      %715 = vmatpush1.bf16.msra.mxu0 %v439
      %716 = vmatprep.subr.bf16.mxu0 %v436
      %717 = vmatpush1.bf16.msra.mxu0 %v435
      %718 = vmatprep.subr.bf16.mxu0 %v432
      %719 = vmatpush1.bf16.msra.mxu0 %v431
      %720 = vmatprep.subr.bf16.mxu0 %v428
      %721 = vmatpush1.bf16.msra.mxu0 %v427
      %722 = vmatprep.subr.bf16.mxu0 %v424
      %723 = vmatpush1.bf16.msra.mxu0 %v423
      %724 = vmatprep.subr.bf16.mxu0 %v420
      %725 = vmatpush1.bf16.msra.mxu0 %v419
      %726 = vmatprep.subr.bf16.mxu0 %v416
      %727 = vmatpush1.bf16.msra.mxu0 %v415
      %728 = vmatprep.subr.bf16.mxu0 %v412
      %729 = vmatpush1.bf16.msra.mxu0 %v411
      %730 = vmatprep.subr.bf16.mxu0 0
      %731 = vmatpush2.bf16.msra.mxu0 0
      %732 = vmatprep.subr.bf16.mxu0 0
      %733 = vmatpush2.bf16.msra.mxu0 0
      %734 = vmatprep.subr.bf16.mxu0 0
      %735 = vmatpush2.bf16.msra.mxu0 0
      %736 = vmatprep.subr.bf16.mxu0 0
      %737 = vmatpush2.bf16.msra.mxu0 0
      %738 = vmatprep.subr.bf16.mxu0 0
      %739 = vmatpush2.bf16.msra.mxu0 0
      %740 = vmatprep.subr.bf16.mxu0 0
      %741 = vmatpush2.bf16.msra.mxu0 0
      %742 = vmatprep.subr.bf16.mxu0 0
      %743 = vmatpush2.bf16.msra.mxu0 0
      %744 = vmatprep.subr.bf16.mxu0 0
      %745 = vmatpush2.bf16.msra.mxu0 0
      %746 = vmatprep.mubr.bf16.mxu0 0
      %747 = vmatmul.mubr.bf16.gmra.mxu0 %v704
      %v748 = vpop.f32.mrf.mxu0
      %v749 = vadd.f32 0.0, %v748
      %v750 = vpop.f32.mrf.mxu0
      %v751 = vadd.f32 0.0, %v750
      %v752 = vpop.f32.mrf.mxu0
      %v753 = vpop.f32.mrf.mxu0
      %754 = vdwg.mxu0
      %755 = vmatprep.subr.bf16.mxu0 %v442
      %756 = vmatpush1.bf16.msra.mxu0 %v441
      %757 = vmatprep.subr.bf16.mxu0 %v438
      %758 = vmatpush1.bf16.msra.mxu0 %v437
      %759 = vmatprep.subr.bf16.mxu0 %v434
      %760 = vmatpush1.bf16.msra.mxu0 %v433
      %761 = vmatprep.subr.bf16.mxu0 %v430
      %762 = vmatpush1.bf16.msra.mxu0 %v429
      %763 = vmatprep.subr.bf16.mxu0 %v426
      %764 = vmatpush1.bf16.msra.mxu0 %v425
      %765 = vmatprep.subr.bf16.mxu0 %v422
      %766 = vmatpush1.bf16.msra.mxu0 %v421
      %767 = vmatprep.subr.bf16.mxu0 %v418
      %768 = vmatpush1.bf16.msra.mxu0 %v417
      %769 = vmatprep.subr.bf16.mxu0 %v414
      %770 = vmatpush1.bf16.msra.mxu0 %v413
      %771 = vmatprep.subr.bf16.mxu0 0
      %772 = vmatpush2.bf16.msra.mxu0 0
      %773 = vmatprep.subr.bf16.mxu0 0
      %774 = vmatpush2.bf16.msra.mxu0 0
      %775 = vmatprep.subr.bf16.mxu0 0
      %776 = vmatpush2.bf16.msra.mxu0 0
      %777 = vmatprep.subr.bf16.mxu0 0
      %778 = vmatpush2.bf16.msra.mxu0 0
      %779 = vmatprep.subr.bf16.mxu0 0
      %780 = vmatpush2.bf16.msra.mxu0 0
      %781 = vmatprep.subr.bf16.mxu0 0
      %782 = vmatpush2.bf16.msra.mxu0 0
      %783 = vmatprep.subr.bf16.mxu0 0
      %784 = vmatpush2.bf16.msra.mxu0 0
      %785 = vmatprep.subr.bf16.mxu0 0
      %786 = vmatpush2.bf16.msra.mxu0 0
      %787 = vmatprep.mubr.bf16.mxu0 0
      %788 = vmatmul.mubr.bf16.gmra.mxu0 %v704
      %v789 = vpop.f32.mrf.mxu0
      %v790 = vadd.f32 0.0, %v789
      %v791 = vpop.f32.mrf.mxu0
      %v792 = vadd.f32 0.0, %v791
      %v793 = vpop.f32.mrf.mxu0
      %v794 = vpop.f32.mrf.mxu0
      %795 = vdwg.mxu0
      %v796 = vadd.f32 %v710, %v749
      %v797 = vadd.f32 %v711, %v751
      %v798 = vadd.f32 %v712, %v790
      %v799 = vadd.f32 %v713, %v792
      %v800 = vxor.u32 %v796, 2147483648
      %v801 = vmul.f32 %v800, 1.442695
      %v802 = vpow.pop %v801
      %v803 = vadd.f32 %v802, 1.0
      %v804 = vrcp.pop %v803
      %v805 = vmul.f32 1.0, %v804
      %v806 = vxor.u32 %v797, 2147483648
      %v807 = vmul.f32 %v806, 1.442695
      %v808 = vpow.pop %v807
      %v809 = vadd.f32 %v808, 1.0
      %v810 = vrcp.pop %v809
      %v811 = vmul.f32 1.0, %v810
      %v812 = vtanh.pop %v798
      %v813 = vxor.u32 %v799, 2147483648
      %v814 = vmul.f32 %v813, 1.442695
      %v815 = vpow.pop %v814
      %v816 = vadd.f32 %v815, 1.0
      %v817 = vrcp.pop %v816
      %v818 = vmul.f32 1.0, %v817
      %v819 = vmul.f32 %v811, %v701
      %v820 = vmul.f32 %v805, %v812
      %v821 = vadd.f32 %v819, %v820
      %v822 = vtanh.pop %v821
      %v823 = vmul.f32 %v818, %v822
      %v824 = vpack.c.bf16 %v823, %v823
      %s825 = scalar_lea.vmem %s156, 8
      %826 = vst [vmem:[%s825] sm:$0xf] %v824
      %827 = vst [vmem:[#allocation4] sm:$0xff] %v823
      %828 = vst [vmem:[#allocation5] sm:$0xff] %v821
      %s829 = smul.u32 3, %s18
      %p830 = scmp.lt.s32.totalorder %s829, 8
      %s831 = scalar_select %p830, %s829, 8
      %p832 = scmp.lt.s32.totalorder %s17, 0
      %s833 = scalar_select %p832, %s17, 0
      %s834 = sadd.s32 %s833, %s831
      %s835 = smul.addr %s834, 4
      %s836 = scalar_lea.vmem %s2, %s835
      // Predicated region
      $region63: #{cnn_to_rnn_forward.10} parent=23 // pred_check
        %p837 = pneg %p73
      $region64: #{cnn_to_rnn_forward.10} parent=23 // pred_check_branch
        %839 = sbr.rel (%p837) target = $region66
      $region65: #{cnn_to_rnn_forward.10} parent=23 // pred_region
        %s840 = smul.u32 3, %s18
      $region66: #{cnn_to_rnn_forward.10} parent=23 // pred_fallthru
        _
    $region24: #{cnn_to_rnn_forward.10} parent=5 // pred_fallthru
      _
    %p841 = scmp.le.s32.totalorder 2, %s8
    // Predicated region
    $region67: #{cnn_to_rnn_forward.10} parent=5 // pred_check
      %p842 = pneg %p841
    $region68: #{cnn_to_rnn_forward.10} parent=5 // pred_check_branch
      %844 = sbr.rel (%p842) target = $region70
    $region69: #{cnn_to_rnn_forward.10} parent=5 // pred_region
      %s845 = ssub.s32 %s8, 2
      // Predicated region
      $region71: #{cnn_to_rnn_forward.10} parent=69 // pred_check
        %p846 = pneg %p79
      $region72: #{cnn_to_rnn_forward.10} parent=69 // pred_check_branch
        %848 = sbr.rel (%p846) target = $region74
      $region73: #{cnn_to_rnn_forward.10} parent=69 // pred_region
        %s849 = smul.u32 3, %s20
        %p850 = scmp.lt.s32.totalorder %s849, 8
        %s851 = scalar_select %p850, %s849, 8
        %p852 = scmp.lt.s32.totalorder %s19, 0
        %s853 = scalar_select %p852, %s19, 0
        %s854 = sadd.s32 %s853, %s851
        %s855 = smul.addr %s854, 4
        %s856 = scalar_lea.vmem %s2, %s855
      $region74: #{cnn_to_rnn_forward.10} parent=69 // pred_fallthru
        _
    $region70: #{cnn_to_rnn_forward.10} parent=5 // pred_fallthru
      _
  $region6: #{cnn_to_rnn_forward.10} parent=0 // loop_footer
    %s12 = sadd.s32 1, %s8
  $region7: #{cnn_to_rnn_forward.10} parent=0 // loop_footer_branch
    %7 = sbr.rel target = $region3
  $region8: #{cnn_to_rnn_forward.10} parent=0 // loop_exit
    _
  %857 = vsyncmov [#allocation3]
  %s858 = vpop.sfrf %857
  %p859 = scmp.eq.s32.totalorder %s858, 0
  %p860 = pneg %p859
  %862 = shalt.err (%p860)

</llo_original>
